<compile_context>
chip_gen: v7x
topology: tpu7x:2x2x1
jax: 0.10.0
libtpu: 0.0.40
codegen_flags: <defaults>
</compile_context>

<pallas_src>
import math

import jax
import jax.numpy as jnp
from jax.experimental import pallas as pl
from jax.experimental.pallas import tpu as pltpu


_INV_SQRT2 = 0.7071067811865476


def _erf(z):
    # Abramowitz & Stegun 7.1.26 polynomial approximation, max abs err 1.5e-7.
    p = 0.3275911
    a1, a2, a3, a4, a5 = (0.254829592, -0.284496736, 1.421413741,
                          -1.453152027, 1.061405429)
    sign = jnp.where(z >= 0.0, 1.0, -1.0)
    az = jnp.abs(z)
    t = 1.0 / (1.0 + p * az)
    poly = t * (a1 + t * (a2 + t * (a3 + t * (a4 + t * a5))))
    return sign * (1.0 - poly * jnp.exp(-az * az))


def _gelu_exact(x):
    # nn.GELU default (erf-based): 0.5 * x * (1 + erf(x / sqrt(2)))
    return 0.5 * x * (1.0 + _erf(x * _INV_SQRT2))


def mlp_kernel(x_ref, w1_ref, b1_ref, w2_ref, b2_ref, o_ref):
    # x_ref: (tm, Din) ; w1: (Din, H) ; b1: (1, H) ; w2: (H, Dout) ; b2: (1, Dout)
    h = jnp.dot(x_ref[...], w1_ref[...], preferred_element_type=jnp.float32)
    h = _gelu_exact(h + b1_ref[...])                   # f32 epilogue
    # TODO(synk): nn.Dropout (train mode) not implemented; p=0.0 / eval => identity.
    h = h.astype(w2_ref.dtype)                         # bf16 for the 2nd MXU matmul
    y = jnp.dot(h, w2_ref[...], preferred_element_type=jnp.float32)
    o_ref[...] = (y + b2_ref[...]).astype(o_ref.dtype)


def mlp_forward(x, w1, b1, w2, b2, *, tm=128, matmul_dtype=jnp.bfloat16):
    """Fused MLP forward.

    x  : (..., Din) float32
    w1 : (Din, H)    (PyTorch fc1.weight transposed)   b1 : (H,)
    w2 : (H, Dout)   (PyTorch fc2.weight transposed)   b2 : (Dout,)
    returns (..., Dout) float32
    """
    lead = x.shape[:-1]
    din = x.shape[-1]
    hid = w1.shape[1]
    dout = w2.shape[1]

    m = int(math.prod(lead))
    x2 = x.reshape(m, din)                   # wrapper-side reshape (free in XLA)

    # Tokens-per-block: multiple of 8 (sublane); pad token count if needed.
    tm = min(tm, max(8, ((m + 7) // 8) * 8))
    m_pad = pl.cdiv(m, tm) * tm
    if m_pad != m:
        x2 = jnp.pad(x2, ((0, m_pad - m), (0, 0)))

    # bf16 matmul operands (f32 accumulation in-kernel); biases stay f32.
    xm = x2.astype(matmul_dtype)
    w1m = w1.astype(matmul_dtype)
    w2m = w2.astype(matmul_dtype)
    b1m = b1.reshape(1, hid).astype(jnp.float32)
    b2m = b2.reshape(1, dout).astype(jnp.float32)

    itemsize = jnp.dtype(matmul_dtype).itemsize
    cost = pl.CostEstimate(
        flops=2 * m_pad * (din * hid + hid * dout),
        transcendentals=m_pad * hid,                 # one exp per hidden activation
        bytes_accessed=(xm.size * itemsize + w1m.size * itemsize
                        + w2m.size * itemsize + b1m.size * 4 + b2m.size * 4
                        + m_pad * dout * 4),
    )

    out = pl.pallas_call(
        mlp_kernel,
        out_shape=jax.ShapeDtypeStruct((m_pad, dout), jnp.float32),
        grid=(m_pad // tm,),
        in_specs=[
            pl.BlockSpec((tm, din), lambda i: (i, 0)),
            pl.BlockSpec((din, hid), lambda i: (0, 0)),   # resident across grid
            pl.BlockSpec((1, hid), lambda i: (0, 0)),
            pl.BlockSpec((hid, dout), lambda i: (0, 0)),  # resident across grid
            pl.BlockSpec((1, dout), lambda i: (0, 0)),
        ],
        out_specs=pl.BlockSpec((tm, dout), lambda i: (i, 0)),
        compiler_params=pltpu.CompilerParams(dimension_semantics=("parallel",)),
        cost_estimate=cost,
    )(xm, w1m, b1m, w2m, b2m)

    if m_pad != m:
        out = out[:m]
    return out.reshape(lead + (dout,))


def _reference(x, w1, b1, w2, b2):
    """Pure-JAX f32 reference (exact erf GELU, highest matmul precision)."""
    h = jnp.dot(x, w1, precision=jax.lax.Precision.HIGHEST) + b1
    h = 0.5 * h * (1.0 + jax.scipy.special.erf(h * _INV_SQRT2))
    return jnp.dot(h, w2, precision=jax.lax.Precision.HIGHEST) + b2


if __name__ == "__main__":
    # Mlp(in_features=128, hidden_features=256, out_features=128), drop=0.0
    B, S, DIN, HID, DOUT = 2, 128, 128, 256, 128

    key = jax.random.PRNGKey(0)
    kx, kw1, kb1, kw2, kb2 = jax.random.split(key, 5)

    x = jax.random.normal(kx, (B, S, DIN), dtype=jnp.float32)
    # nn.Linear-style init; weights stored pre-transposed as (fan_in, fan_out).
    w1 = jax.random.uniform(kw1, (DIN, HID), minval=-1.0, maxval=1.0) / math.sqrt(DIN)
    b1 = jax.random.uniform(kb1, (HID,), minval=-1.0, maxval=1.0) / math.sqrt(DIN)
    w2 = jax.random.uniform(kw2, (HID, DOUT), minval=-1.0, maxval=1.0) / math.sqrt(HID)
    b2 = jax.random.uniform(kb2, (DOUT,), minval=-1.0, maxval=1.0) / math.sqrt(HID)

    out = jax.block_until_ready(mlp_forward(x, w1, b1, w2, b2))
    ref = _reference(x, w1, b1, w2, b2)

    assert out.shape == (B, S, DOUT)
    max_err = jnp.max(jnp.abs(out - ref))
    # bf16 matmul inputs with f32 accumulation -> loosened tolerance vs f32 ref.
    assert jnp.allclose(out, ref, atol=2e-2, rtol=2e-2), f"max abs err = {max_err}"

    print("KERNEL_OK")
</pallas_src>

<mosaic_0001>
module attributes {stable_mosaic.version = 11 : i64} {
  func.func @mlp_kernel(%arg0: i32, %arg1: memref<128x128xbf16, #tpu.memory_space<vmem>>, %arg2: memref<128x256xbf16, #tpu.memory_space<vmem>>, %arg3: memref<1x256xf32, #tpu.memory_space<vmem>>, %arg4: memref<256x128xbf16, #tpu.memory_space<vmem>>, %arg5: memref<1x128xf32, #tpu.memory_space<vmem>>, %arg6: memref<128x128xf32, #tpu.memory_space<vmem>>) attributes {dimension_semantics = [#tpu.dimension_semantics<parallel>], iteration_bounds = array<i64: 2>, scalar_prefetch = 0 : i64, scratch_operands = 0 : i64, tpu.core_type = #tpu.core_type<tc>, window_params = [{transform_indices = @transform_0, window_bounds = array<i64: 128, 128>}, {pipeline_mode = #tpu.pipeline_mode<synchronous>, transform_indices = @transform_1, window_bounds = array<i64: 128, 256>}, {pipeline_mode = #tpu.pipeline_mode<synchronous>, transform_indices = @transform_2, window_bounds = array<i64: 1, 256>}, {pipeline_mode = #tpu.pipeline_mode<synchronous>, transform_indices = @transform_3, window_bounds = array<i64: 256, 128>}, {pipeline_mode = #tpu.pipeline_mode<synchronous>, transform_indices = @transform_4, window_bounds = array<i64: 1, 128>}, {transform_indices = @transform_5, window_bounds = array<i64: 128, 128>}]} {
    %c0 = arith.constant 0 : index
    %c0_0 = arith.constant 0 : index
    %0 = vector.load %arg1[%c0, %c0_0] : memref<128x128xbf16, #tpu.memory_space<vmem>>, vector<128x128xbf16>
    %c0_1 = arith.constant 0 : index
    %c0_2 = arith.constant 0 : index
    %1 = vector.load %arg2[%c0_1, %c0_2] : memref<128x256xbf16, #tpu.memory_space<vmem>>, vector<128x256xbf16>
    %cst = arith.constant dense<0.000000e+00> : vector<128x256xf32>
    %2 = tpu.matmul %0, %1, %cst {dimension_numbers = #tpu.dot_dimension_numbers<[1], [0], [0], [1], [0, 0, 1, 1], [], []>} : vector<128x128xbf16>, vector<128x256xbf16>, vector<128x256xf32> -> vector<128x256xf32>
    %c0_3 = arith.constant 0 : index
    %c0_4 = arith.constant 0 : index
    %3 = vector.load %arg3[%c0_3, %c0_4] : memref<1x256xf32, #tpu.memory_space<vmem>>, vector<1x256xf32>
    %4 = vector.broadcast %3 : vector<1x256xf32> to vector<128x256xf32>
    %5 = arith.addf %2, %4 : vector<128x256xf32>
    %cst_5 = arith.constant 5.000000e-01 : f32
    %6 = vector.broadcast %cst_5 : f32 to vector<128x256xf32>
    %7 = arith.mulf %6, %5 : vector<128x256xf32>
    %cst_6 = arith.constant 0.707106769 : f32
    %8 = vector.broadcast %cst_6 : f32 to vector<128x256xf32>
    %9 = arith.mulf %5, %8 : vector<128x256xf32>
    %cst_7 = arith.constant 0.000000e+00 : f32
    %10 = vector.broadcast %cst_7 : f32 to vector<128x256xf32>
    %11 = arith.cmpf oge, %9, %10 : vector<128x256xf32>
    %cst_8 = arith.constant 1.000000e+00 : f32
    %cst_9 = arith.constant -1.000000e+00 : f32
    %12 = vector.broadcast %cst_8 : f32 to vector<128x256xf32>
    %13 = vector.broadcast %cst_9 : f32 to vector<128x256xf32>
    %14 = arith.select %11, %12, %13 : vector<128x256xi1>, vector<128x256xf32>
    %15 = math.absf %9 : vector<128x256xf32>
    %cst_10 = arith.constant 0.327591091 : f32
    %16 = vector.broadcast %cst_10 : f32 to vector<128x256xf32>
    %17 = arith.mulf %16, %15 : vector<128x256xf32>
    %cst_11 = arith.constant 1.000000e+00 : f32
    %18 = vector.broadcast %cst_11 : f32 to vector<128x256xf32>
    %19 = arith.addf %18, %17 : vector<128x256xf32>
    %cst_12 = arith.constant 1.000000e+00 : f32
    %20 = vector.broadcast %cst_12 : f32 to vector<128x256xf32>
    %21 = arith.divf %20, %19 : vector<128x256xf32>
    %cst_13 = arith.constant 1.06140542 : f32
    %22 = vector.broadcast %cst_13 : f32 to vector<128x256xf32>
    %23 = arith.mulf %21, %22 : vector<128x256xf32>
    %cst_14 = arith.constant -1.45315206 : f32
    %24 = vector.broadcast %cst_14 : f32 to vector<128x256xf32>
    %25 = arith.addf %24, %23 : vector<128x256xf32>
    %26 = arith.mulf %21, %25 : vector<128x256xf32>
    %cst_15 = arith.constant 1.42141378 : f32
    %27 = vector.broadcast %cst_15 : f32 to vector<128x256xf32>
    %28 = arith.addf %27, %26 : vector<128x256xf32>
    %29 = arith.mulf %21, %28 : vector<128x256xf32>
    %cst_16 = arith.constant -0.284496725 : f32
    %30 = vector.broadcast %cst_16 : f32 to vector<128x256xf32>
    %31 = arith.addf %30, %29 : vector<128x256xf32>
    %32 = arith.mulf %21, %31 : vector<128x256xf32>
    %cst_17 = arith.constant 0.254829586 : f32
    %33 = vector.broadcast %cst_17 : f32 to vector<128x256xf32>
    %34 = arith.addf %33, %32 : vector<128x256xf32>
    %35 = arith.mulf %21, %34 : vector<128x256xf32>
    %cst_18 = arith.constant 0.000000e+00 : f32
    %36 = vector.broadcast %cst_18 : f32 to vector<128x256xf32>
    %37 = arith.subf %36, %15 : vector<128x256xf32>
    %38 = arith.mulf %37, %15 : vector<128x256xf32>
    %39 = math.exp %38 : vector<128x256xf32>
    %40 = arith.mulf %35, %39 : vector<128x256xf32>
    %cst_19 = arith.constant 1.000000e+00 : f32
    %41 = vector.broadcast %cst_19 : f32 to vector<128x256xf32>
    %42 = arith.subf %41, %40 : vector<128x256xf32>
    %43 = arith.mulf %14, %42 : vector<128x256xf32>
    %cst_20 = arith.constant 1.000000e+00 : f32
    %44 = vector.broadcast %cst_20 : f32 to vector<128x256xf32>
    %45 = arith.addf %44, %43 : vector<128x256xf32>
    %46 = arith.mulf %7, %45 : vector<128x256xf32>
    %47 = arith.truncf %46 : vector<128x256xf32> to vector<128x256xbf16>
    %c0_21 = arith.constant 0 : index
    %c0_22 = arith.constant 0 : index
    %48 = vector.load %arg4[%c0_21, %c0_22] : memref<256x128xbf16, #tpu.memory_space<vmem>>, vector<256x128xbf16>
    %cst_23 = arith.constant dense<0.000000e+00> : vector<128x128xf32>
    %49 = tpu.matmul %47, %48, %cst_23 {dimension_numbers = #tpu.dot_dimension_numbers<[1], [0], [0], [1], [0, 0, 1, 1], [], []>} : vector<128x256xbf16>, vector<256x128xbf16>, vector<128x128xf32> -> vector<128x128xf32>
    %c0_24 = arith.constant 0 : index
    %c0_25 = arith.constant 0 : index
    %50 = vector.load %arg5[%c0_24, %c0_25] : memref<1x128xf32, #tpu.memory_space<vmem>>, vector<1x128xf32>
    %51 = vector.broadcast %50 : vector<1x128xf32> to vector<128x128xf32>
    %52 = arith.addf %49, %51 : vector<128x128xf32>
    %c0_26 = arith.constant 0 : index
    %c0_27 = arith.constant 0 : index
    %53 = vector.load %arg6[%c0_26, %c0_27] : memref<128x128xf32, #tpu.memory_space<vmem>>, vector<128x128xf32>
    tpu.vector_store %arg6[%c0_26, %c0_27], %52 {strides = array<i32>} : memref<128x128xf32, #tpu.memory_space<vmem>>, vector<128x128xf32>,
    return
  }
  func.func @transform_0(%arg0: i32) -> (i32, i32) {
    %c0_i32 = arith.constant 0 : i32
    %c0_i32_0 = arith.constant 0 : i32
    return %arg0, %c0_i32 : i32, i32
  }
  func.func @transform_1(%arg0: i32) -> (i32, i32) {
    %c0_i32 = arith.constant 0 : i32
    %c0_i32_0 = arith.constant 0 : i32
    %c0_i32_1 = arith.constant 0 : i32
    return %c0_i32, %c0_i32_0 : i32, i32
  }
  func.func @transform_2(%arg0: i32) -> (i32, i32) {
    %c0_i32 = arith.constant 0 : i32
    %c0_i32_0 = arith.constant 0 : i32
    %c0_i32_1 = arith.constant 0 : i32
    return %c0_i32, %c0_i32_0 : i32, i32
  }
  func.func @transform_3(%arg0: i32) -> (i32, i32) {
    %c0_i32 = arith.constant 0 : i32
    %c0_i32_0 = arith.constant 0 : i32
    %c0_i32_1 = arith.constant 0 : i32
    return %c0_i32, %c0_i32_0 : i32, i32
  }
  func.func @transform_4(%arg0: i32) -> (i32, i32) {
    %c0_i32 = arith.constant 0 : i32
    %c0_i32_0 = arith.constant 0 : i32
    %c0_i32_1 = arith.constant 0 : i32
    return %c0_i32, %c0_i32_0 : i32, i32
  }
  func.func @transform_5(%arg0: i32) -> (i32, i32) {
    %c0_i32 = arith.constant 0 : i32
    %c0_i32_0 = arith.constant 0 : i32
    return %arg0, %c0_i32 : i32, i32
  }
}

</mosaic_0001>

<llo_original>
// kernel: tpu_custom_call.1
$region0: #{tpu_custom_call.1}
  #allocation0 [shape = 'u32[]', space=smem, size = 0x4, offset = 0x4, fixed_abs, tag = 'smem constant byte address 0x4 - core index']
  #allocation1 [shape = 'u32[144,128]{1,0:T(1,128)}', space=vmem, size = 0x12000, scoped, tag = 'internal scratch']
  %s0 = inlined_call_operand.hbm [shape: bf16[256,128], index: 0, kind: input, shape index: {}]
  %s1 = inlined_call_operand.hbm [shape: bf16[128,256], index: 1, kind: input, shape index: {}]
  %s2 = inlined_call_operand.vmem [shape: f32[1,256], index: 2, kind: input, shape index: {}]
  %s3 = inlined_call_operand.hbm [shape: bf16[256,128], index: 3, kind: input, shape index: {}]
  %s4 = inlined_call_operand.vmem [shape: f32[1,128], index: 4, kind: input, shape index: {}]
  %s5 = inlined_call_operand.hbm [shape: f32[256,128], index: 5, kind: output, shape index: {}]
  %s6 = sld [smem:[#allocation0]]
  $region65: #{tpu_custom_call.1} parent=0
    _
  %s8 = ssub.s32 1, %s6
  %s9 = scalar_select 0, %s8, %s6
  $region1: #{tpu_custom_call.1} parent=0
    #allocation2 [shape = 'u8[65536]{0}', space=vmem, size = 0x10000, scoped, tag = 'input window, operand 0']
    #allocation3 [shape = 's32[2]{0}', space=sflag, size = 0x8, scoped, tag = 'scoped memory for tpu_custom_call.1']
    #allocation4 [shape = 's32[2]{0}', space=sflag, size = 0x8, scoped, tag = 'scoped memory for tpu_custom_call.1']
    #allocation5 [shape = 'u8[65536]{0}', space=vmem, size = 0x10000, scoped, tag = 'input window, operand 1, single buffered']
    #allocation6 [shape = 's32[1]{0}', space=sflag, size = 0x4, scoped, tag = 'scoped memory for tpu_custom_call.1']
    #allocation7 [shape = 'u8[65536]{0}', space=vmem, size = 0x10000, scoped, tag = 'input window, operand 3, single buffered']
    #allocation8 [shape = 'u8[131072]{0}', space=vmem, size = 0x20000, scoped, tag = 'output window, operand 0']
    %10 = vsyncpa [#allocation3], 0
    %s11 = scalar_lea.sflag [#allocation3], 1
    %12 = vsyncpa %s11, 0
    %13 = vsyncpa [#allocation6], 0
    %14 = vsyncpa [#allocation4], 0
    %s15 = scalar_lea.sflag [#allocation4], 1
    %16 = vsyncpa %s15, 0
    loop: start=0, step=1, limit=4
    $region2: #{tpu_custom_call.1} parent=1 // loop_pre_header
      _
    $region3: #{tpu_custom_call.1} parent=1 // loop_header
      %s18 = sphi 0, %s22
      %p19 = scmp.ge.s32.totalorder %s18, 4
      %s28 = sphi 0, %s30
      %s31 = sphi 0, %s28
      %s32 = sphi 0, %s31
      %s48 = sphi 0, %s32
      %s52 = sphi 0, %s52
      %s54 = sphi 0, %s52
      %s55 = sphi 0, %s54
      %s69 = sphi 0, %s55
      %s73 = sphi 0, %s73
      %s75 = sphi 0, %s73
      %s76 = sphi 0, %s75
      %s90 = sphi 0, %s76
      %s94 = sphi 0, %s94
      %s96 = sphi 0, %s94
      %s97 = sphi 0, %s96
      %s111 = sphi 0, %s97
      %s115 = sphi 0, %s115
      %s117 = sphi 0, %s115
      %s118 = sphi 0, %s117
      %s132 = sphi 0, %s118
      %s138 = sphi 0, %s140
      %s141 = sphi 0, %s138
      %s142 = sphi 0, %s141
      %s158 = sphi 0, %s142
    $region4: #{tpu_custom_call.1} parent=1 // loop_header_branch
      %21 = sbr.rel (%p19) target = $region8
    $region5: #{tpu_custom_call.1} parent=1 // loop_body
      %s23 = ssub.s32 %s18, 1
      %s24 = ssub.s32 %s18, 2
      %s25 = sadd.s32 %s18, 1
      %s26 = ssub.s32 %s18, %s25
      %p27 = scmp.eq.s32.totalorder %s26, 0
      %s29 = sadd.s32 %s28, 1
      %s30 = scalar_select %p27, %s28, %s29
      %p33 = pneg %p27
      %p34 = scmp.eq.s32.totalorder %s18, 1
      %p35 = por %p33, %p34
      %p36 = scmp.ne.s32.totalorder %s28, %s31
      %p37 = scmp.eq.s32.totalorder %s18, 0
      %p38 = por %p36, %p37
      %p39 = scmp.ne.s32.totalorder %s28, %s31
      %p40 = scmp.eq.s32.totalorder %s23, 1
      %p41 = por %p39, %p40
      %p42 = scmp.ne.s32.totalorder %s31, %s32
      %p43 = scmp.eq.s32.totalorder %s23, 0
      %p44 = por %p42, %p43
      %p45 = scmp.ne.s32.totalorder %s31, %s32
      %p46 = scmp.eq.s32.totalorder %s24, 1
      %p47 = por %p45, %p46
      %p49 = scmp.ne.s32.totalorder %s32, %s48
      %p50 = scmp.eq.s32.totalorder %s24, 0
      %p51 = por %p49, %p50
      %s53 = sadd.s32 %s52, 1
      %p56 = scmp.eq.s32.totalorder %s18, 1
      %p57 = scmp.ne.s32.totalorder %s52, %s54
      %p58 = scmp.eq.s32.totalorder %s18, 0
      %p59 = por %p57, %p58
      %p60 = scmp.ne.s32.totalorder %s52, %s54
      %p61 = scmp.eq.s32.totalorder %s23, 1
      %p62 = por %p60, %p61
      %p63 = scmp.ne.s32.totalorder %s54, %s55
      %p64 = scmp.eq.s32.totalorder %s23, 0
      %p65 = por %p63, %p64
      %p66 = scmp.ne.s32.totalorder %s54, %s55
      %p67 = scmp.eq.s32.totalorder %s24, 1
      %p68 = por %p66, %p67
      %p70 = scmp.ne.s32.totalorder %s55, %s69
      %p71 = scmp.eq.s32.totalorder %s24, 0
      %p72 = por %p70, %p71
      %s74 = sadd.s32 %s73, 1
      %p77 = scmp.eq.s32.totalorder %s18, 1
      %p78 = scmp.ne.s32.totalorder %s73, %s75
      %p79 = scmp.eq.s32.totalorder %s18, 0
      %p80 = por %p78, %p79
      %p81 = scmp.ne.s32.totalorder %s73, %s75
      %p82 = scmp.eq.s32.totalorder %s23, 1
      %p83 = por %p81, %p82
      %p84 = scmp.ne.s32.totalorder %s75, %s76
      %p85 = scmp.eq.s32.totalorder %s23, 0
      %p86 = por %p84, %p85
      %p87 = scmp.ne.s32.totalorder %s75, %s76
      %p88 = scmp.eq.s32.totalorder %s24, 1
      %p89 = por %p87, %p88
      %p91 = scmp.ne.s32.totalorder %s76, %s90
      %p92 = scmp.eq.s32.totalorder %s24, 0
      %p93 = por %p91, %p92
      %s95 = sadd.s32 %s94, 1
      %p98 = scmp.eq.s32.totalorder %s18, 1
      %p99 = scmp.ne.s32.totalorder %s94, %s96
      %p100 = scmp.eq.s32.totalorder %s18, 0
      %p101 = por %p99, %p100
      %p102 = scmp.ne.s32.totalorder %s94, %s96
      %p103 = scmp.eq.s32.totalorder %s23, 1
      %p104 = por %p102, %p103
      %p105 = scmp.ne.s32.totalorder %s96, %s97
      %p106 = scmp.eq.s32.totalorder %s23, 0
      %p107 = por %p105, %p106
      %p108 = scmp.ne.s32.totalorder %s96, %s97
      %p109 = scmp.eq.s32.totalorder %s24, 1
      %p110 = por %p108, %p109
      %p112 = scmp.ne.s32.totalorder %s97, %s111
      %p113 = scmp.eq.s32.totalorder %s24, 0
      %p114 = por %p112, %p113
      %s116 = sadd.s32 %s115, 1
      %p119 = scmp.eq.s32.totalorder %s18, 1
      %p120 = scmp.ne.s32.totalorder %s115, %s117
      %p121 = scmp.eq.s32.totalorder %s18, 0
      %p122 = por %p120, %p121
      %p123 = scmp.ne.s32.totalorder %s115, %s117
      %p124 = scmp.eq.s32.totalorder %s23, 1
      %p125 = por %p123, %p124
      %p126 = scmp.ne.s32.totalorder %s117, %s118
      %p127 = scmp.eq.s32.totalorder %s23, 0
      %p128 = por %p126, %p127
      %p129 = scmp.ne.s32.totalorder %s117, %s118
      %p130 = scmp.eq.s32.totalorder %s24, 1
      %p131 = por %p129, %p130
      %p133 = scmp.ne.s32.totalorder %s118, %s132
      %p134 = scmp.eq.s32.totalorder %s24, 0
      %p135 = por %p133, %p134
      %s136 = ssub.s32 %s18, %s25
      %p137 = scmp.eq.s32.totalorder %s136, 0
      %s139 = sadd.s32 %s138, 1
      %s140 = scalar_select %p137, %s138, %s139
      %p143 = pneg %p137
      %p144 = scmp.eq.s32.totalorder %s18, 1
      %p145 = por %p143, %p144
      %p146 = scmp.ne.s32.totalorder %s138, %s141
      %p147 = scmp.eq.s32.totalorder %s18, 0
      %p148 = por %p146, %p147
      %p149 = scmp.ne.s32.totalorder %s138, %s141
      %p150 = scmp.eq.s32.totalorder %s23, 1
      %p151 = por %p149, %p150
      %p152 = scmp.ne.s32.totalorder %s141, %s142
      %p153 = scmp.eq.s32.totalorder %s23, 0
      %p154 = por %p152, %p153
      %p155 = scmp.ne.s32.totalorder %s141, %s142
      %p156 = scmp.eq.s32.totalorder %s24, 1
      %p157 = por %p155, %p156
      %p159 = scmp.ne.s32.totalorder %s142, %s158
      %p160 = scmp.eq.s32.totalorder %s24, 0
      %p161 = por %p159, %p160
      %p162 = scmp.le.s32.totalorder 1, %s18
      %p163 = scmp.lt.s32.totalorder %s18, 3
      %p164 = pnand %p162, %p163
      %p165 = pneg %p164
      // Predicated region
      $region9: #{tpu_custom_call.1} parent=5 // pred_check
        _
      $region10: #{tpu_custom_call.1} parent=5 // pred_check_branch
        %167 = sbr.rel (%p164) target = $region12
      $region11: #{tpu_custom_call.1} parent=5 // pred_region
        %s168 = ssub.s32 %s18, 1
        // Predicated region
        $region13: #{tpu_custom_call.1} parent=11 // pred_check
          %p169 = pneg %p65
        $region14: #{tpu_custom_call.1} parent=11 // pred_check_branch
          %171 = sbr.rel (%p169) target = $region16
        $region15: #{tpu_custom_call.1} parent=11 // pred_region
          %s173 = ssub.s32 2048, 2048
          %174 = vsyncadd [#allocation6], %s173
          %s175 = sshll.u32 [#allocation5], 4
          %s176 = int_to_ptr.vmem [resolvable:$true] %s175
          %181 = dma.hbm_to_vmem [thread:$0]  %s1, 2048, %s176, [#allocation6], 128, 128, 8
        $region16: #{tpu_custom_call.1} parent=11 // pred_fallthru
          _
        // Predicated region
        $region17: #{tpu_custom_call.1} parent=11 // pred_check
          %p182 = pneg %p86
        $region18: #{tpu_custom_call.1} parent=11 // pred_check_branch
          %184 = sbr.rel (%p182) target = $region20
        $region19: #{tpu_custom_call.1} parent=11 // pred_region
          _
        $region20: #{tpu_custom_call.1} parent=11 // pred_fallthru
          _
        // Predicated region
        $region21: #{tpu_custom_call.1} parent=11 // pred_check
          %p185 = pneg %p107
        $region22: #{tpu_custom_call.1} parent=11 // pred_check_branch
          %187 = sbr.rel (%p185) target = $region24
        $region23: #{tpu_custom_call.1} parent=11 // pred_region
          %s189 = ssub.s32 2048, 2048
          %190 = vsyncadd [#allocation6], %s189
          %s191 = sshll.u32 [#allocation7], 4
          %s192 = int_to_ptr.vmem [resolvable:$true] %s191
          %197 = dma.hbm_to_vmem [thread:$0]  %s3, 2048, %s192, [#allocation6], 64, 64, 4
        $region24: #{tpu_custom_call.1} parent=11 // pred_fallthru
          _
        // Predicated region
        $region25: #{tpu_custom_call.1} parent=11 // pred_check
          %p198 = pneg %p128
        $region26: #{tpu_custom_call.1} parent=11 // pred_check_branch
          %200 = sbr.rel (%p198) target = $region28
        $region27: #{tpu_custom_call.1} parent=11 // pred_region
          _
        $region28: #{tpu_custom_call.1} parent=11 // pred_fallthru
          _
      $region12: #{tpu_custom_call.1} parent=5 // pred_fallthru
        _
      %p201 = scmp.lt.s32.totalorder %s18, 2
      // Predicated region
      $region29: #{tpu_custom_call.1} parent=5 // pred_check
        %p202 = pneg %p201
      $region30: #{tpu_custom_call.1} parent=5 // pred_check_branch
        %204 = sbr.rel (%p202) target = $region32
      $region31: #{tpu_custom_call.1} parent=5 // pred_region
        // Predicated region
        $region33: #{tpu_custom_call.1} parent=31 // pred_check
          %p205 = pneg %p38
        $region34: #{tpu_custom_call.1} parent=31 // pred_check_branch
          %207 = sbr.rel (%p205) target = $region36
        $region35: #{tpu_custom_call.1} parent=31 // pred_region
          %s208 = sand.u32 %s28, 1
          %s209 = scalar_lea.sflag [#allocation3], %s208
          %s210 = sand.u32 %s28, 1
          %s211 = smul.addr %s210, 64
          %s212 = scalar_lea.vmem [#allocation2], %s211
          %s213 = smul.u32 16, %s18
          %s215 = ssub.s32 1024, 1024
          %216 = vsyncadd %s209, %s215
          %s217 = smul.addr %s213, 64
          %s218 = scalar_lea.hbm %s0, %s217
          %s219 = sshll.u32 %s212, 4
          %s220 = int_to_ptr.vmem [resolvable:$true] %s219
          %225 = dma.hbm_to_vmem [thread:$0]  %s218, 1024, %s220, %s209, 64, 64, 4
        $region36: #{tpu_custom_call.1} parent=31 // pred_fallthru
          _
      $region32: #{tpu_custom_call.1} parent=5 // pred_fallthru
        _
      %p226 = scmp.le.s32.totalorder 1, %s18
      %p227 = scmp.lt.s32.totalorder %s18, 3
      %p228 = pnand %p226, %p227
      %p229 = pneg %p228
      // Predicated region
      $region37: #{tpu_custom_call.1} parent=5 // pred_check
        _
      $region38: #{tpu_custom_call.1} parent=5 // pred_check_branch
        %231 = sbr.rel (%p228) target = $region40
      $region39: #{tpu_custom_call.1} parent=5 // pred_region
        %s232 = ssub.s32 %s18, 1
        %s233 = sand.u32 %s31, 1
        %s234 = scalar_lea.sflag [#allocation3], %s233
        %s235 = sand.u32 %s31, 1
        %s236 = smul.addr %s235, 64
        %s237 = scalar_lea.vmem [#allocation2], %s236
        // Predicated region
        $region41: #{tpu_custom_call.1} parent=39 // pred_check
          %p238 = pneg %p44
        $region42: #{tpu_custom_call.1} parent=39 // pred_check_branch
          %240 = sbr.rel (%p238) target = $region44
        $region43: #{tpu_custom_call.1} parent=39 // pred_region
          %241 = dma.done %s234, 1024
        $region44: #{tpu_custom_call.1} parent=39 // pred_fallthru
          _
        // Predicated region
        $region45: #{tpu_custom_call.1} parent=39 // pred_check
          %p242 = pneg %p65
        $region46: #{tpu_custom_call.1} parent=39 // pred_check_branch
          %244 = sbr.rel (%p242) target = $region48
        $region47: #{tpu_custom_call.1} parent=39 // pred_region
          %245 = dma.done [#allocation6], 2048
        $region48: #{tpu_custom_call.1} parent=39 // pred_fallthru
          _
        // Predicated region
        $region49: #{tpu_custom_call.1} parent=39 // pred_check
          %p246 = pneg %p107
        $region50: #{tpu_custom_call.1} parent=39 // pred_check_branch
          %248 = sbr.rel (%p246) target = $region52
        $region51: #{tpu_custom_call.1} parent=39 // pred_region
          %249 = dma.done [#allocation6], 2048
        $region52: #{tpu_custom_call.1} parent=39 // pred_fallthru
          _
        %s250 = sand.u32 %s31, 1
        %s251 = scalar_lea.sflag [#allocation3], %s250
        %s252 = sand.u32 %s31, 1
        %s253 = smul.addr %s252, 64
        %s254 = scalar_lea.vmem [#allocation2], %s253
        %p255 = pneg %p44
        %p256 = pneg %p41
        %p257 = pneg %p65
        %p258 = pneg %p62
        %p259 = pneg %p86
        %p260 = pneg %p83
        %p261 = pneg %p107
        %p262 = pneg %p104
        %p263 = pneg %p128
        %p264 = pneg %p125
        %p265 = pneg %p154
        %p266 = pneg %p151
        %s267 = sand.u32 %s141, 1
        %s268 = scalar_lea.sflag [#allocation4], %s267
        %s269 = sand.u32 %s141, 1
        %s270 = smul.addr %s269, 128
        %s271 = scalar_lea.vmem [#allocation8], %s270
        %s272 = smul.u32 16, %s23
        %s273 = smul.u32 16, %s23
        %v275 = vld [vmem:[%s237] sm:$0xf]
        %v276 = vld [vmem:[%s237 + $0x4] sm:$0xf]
        %v277 = vld [vmem:[%s237 + $0x8] sm:$0xf]
        %v278 = vld [vmem:[%s237 + $0xc] sm:$0xf]
        %v279 = vld [vmem:[%s237 + $0x10] sm:$0xf]
        %v280 = vld [vmem:[%s237 + $0x14] sm:$0xf]
        %v281 = vld [vmem:[%s237 + $0x18] sm:$0xf]
        %v282 = vld [vmem:[%s237 + $0x1c] sm:$0xf]
        %v283 = vld [vmem:[%s237 + $0x20] sm:$0xf]
        %v284 = vld [vmem:[%s237 + $0x24] sm:$0xf]
        %v285 = vld [vmem:[%s237 + $0x28] sm:$0xf]
        %v286 = vld [vmem:[%s237 + $0x2c] sm:$0xf]
        %v287 = vld [vmem:[%s237 + $0x30] sm:$0xf]
        %v288 = vld [vmem:[%s237 + $0x34] sm:$0xf]
        %v289 = vld [vmem:[%s237 + $0x38] sm:$0xf]
        %v290 = vld [vmem:[%s237 + $0x3c] sm:$0xf]
        %v291 = vld [vmem:[#allocation5] sm:$0xff]
        %v292 = vld [vmem:[#allocation5 + $0x8] sm:$0xff]
        %v293 = vld [vmem:[#allocation5 + $0x10] sm:$0xff]
        %v294 = vld [vmem:[#allocation5 + $0x18] sm:$0xff]
        %v295 = vld [vmem:[#allocation5 + $0x20] sm:$0xff]
        %v296 = vld [vmem:[#allocation5 + $0x28] sm:$0xff]
        %v297 = vld [vmem:[#allocation5 + $0x30] sm:$0xff]
        %v298 = vld [vmem:[#allocation5 + $0x38] sm:$0xff]
        %v299 = vld [vmem:[#allocation5 + $0x40] sm:$0xff]
        %v300 = vld [vmem:[#allocation5 + $0x48] sm:$0xff]
        %v301 = vld [vmem:[#allocation5 + $0x50] sm:$0xff]
        %v302 = vld [vmem:[#allocation5 + $0x58] sm:$0xff]
        %v303 = vld [vmem:[#allocation5 + $0x60] sm:$0xff]
        %v304 = vld [vmem:[#allocation5 + $0x68] sm:$0xff]
        %v305 = vld [vmem:[#allocation5 + $0x70] sm:$0xff]
        %v306 = vld [vmem:[#allocation5 + $0x78] sm:$0xff]
        %v307 = vld [vmem:[%s2] sm:$0x3]
        %v309 = vlaneseq
        %v310 = vshrl.u32 %v309, 7
        %v311 = vsub.s32 0, %v310
        %v312 = vrot.slane %v307, %v311
        %v313 = vlaneseq
        %v314 = vshrl.u32 %v313, 7
        %v315 = vsub.s32 1, %v314
        %v316 = vrot.slane %v307, %v315
        %v335 = vunpack.c.l.b16 %v275
        %v336 = vunpack.c.l.b16 %v276
        %v337 = vunpack.c.l.b16 %v277
        %v338 = vunpack.c.l.b16 %v278
        %v339 = vunpack.c.l.b16 %v279
        %v340 = vunpack.c.l.b16 %v280
        %v341 = vunpack.c.l.b16 %v281
        %v342 = vunpack.c.l.b16 %v282
        %v343 = vunpack.c.l.b16 %v283
        %v344 = vunpack.c.l.b16 %v284
        %v345 = vunpack.c.l.b16 %v285
        %v346 = vunpack.c.l.b16 %v286
        %v347 = vunpack.c.l.b16 %v287
        %v348 = vunpack.c.l.b16 %v288
        %v349 = vunpack.c.l.b16 %v289
        %v350 = vunpack.c.l.b16 %v290
        %v351 = vpack.c.b16 %v336, %v335
        %v352 = vpack.c.b16 %v338, %v337
        %v353 = vpack.c.b16 %v340, %v339
        %v354 = vpack.c.b16 %v342, %v341
        %v355 = vpack.c.b16 %v344, %v343
        %v356 = vpack.c.b16 %v346, %v345
        %v357 = vpack.c.b16 %v348, %v347
        %v358 = vpack.c.b16 %v350, %v349
        %v383 = vunpack.c.l.b16 %v291
        %v384 = vunpack.c.h.b16 %v291
        %v385 = vunpack.c.l.b16 %v292
        %v386 = vunpack.c.h.b16 %v292
        %v387 = vunpack.c.l.b16 %v293
        %v388 = vunpack.c.h.b16 %v293
        %v389 = vunpack.c.l.b16 %v294
        %v390 = vunpack.c.h.b16 %v294
        %v391 = vunpack.c.l.b16 %v295
        %v392 = vunpack.c.h.b16 %v295
        %v393 = vunpack.c.l.b16 %v296
        %v394 = vunpack.c.h.b16 %v296
        %v395 = vunpack.c.l.b16 %v297
        %v396 = vunpack.c.h.b16 %v297
        %v397 = vunpack.c.l.b16 %v298
        %v398 = vunpack.c.h.b16 %v298
        %v399 = vunpack.c.l.b16 %v299
        %v400 = vunpack.c.h.b16 %v299
        %v401 = vunpack.c.l.b16 %v300
        %v402 = vunpack.c.h.b16 %v300
        %v403 = vunpack.c.l.b16 %v301
        %v404 = vunpack.c.h.b16 %v301
        %v405 = vunpack.c.l.b16 %v302
        %v406 = vunpack.c.h.b16 %v302
        %v407 = vunpack.c.l.b16 %v303
        %v408 = vunpack.c.h.b16 %v303
        %v409 = vunpack.c.l.b16 %v304
        %v410 = vunpack.c.h.b16 %v304
        %v411 = vunpack.c.l.b16 %v305
        %v412 = vunpack.c.h.b16 %v305
        %v413 = vunpack.c.l.b16 %v306
        %v414 = vunpack.c.h.b16 %v306
        %v415 = vpack.c.b16 %v385, %v383
        %v416 = vpack.c.b16 %v386, %v384
        %v417 = vpack.c.b16 %v389, %v387
        %v418 = vpack.c.b16 %v390, %v388
        %v419 = vpack.c.b16 %v393, %v391
        %v420 = vpack.c.b16 %v394, %v392
        %v421 = vpack.c.b16 %v397, %v395
        %v422 = vpack.c.b16 %v398, %v396
        %v423 = vpack.c.b16 %v401, %v399
        %v424 = vpack.c.b16 %v402, %v400
        %v425 = vpack.c.b16 %v405, %v403
        %v426 = vpack.c.b16 %v406, %v404
        %v427 = vpack.c.b16 %v409, %v407
        %v428 = vpack.c.b16 %v410, %v408
        %v429 = vpack.c.b16 %v413, %v411
        %v430 = vpack.c.b16 %v414, %v412
        %447 = vmatprep.subr.bf16.mxu0 %v416
        %448 = vmatpush1.bf16.msra.mxu0 %v415
        %449 = vmatprep.subr.bf16.mxu0 %v418
        %450 = vmatpush1.bf16.msra.mxu0 %v417
        %451 = vmatprep.subr.bf16.mxu0 %v420
        %452 = vmatpush1.bf16.msra.mxu0 %v419
        %453 = vmatprep.subr.bf16.mxu0 %v422
        %454 = vmatpush1.bf16.msra.mxu0 %v421
        %455 = vmatprep.subr.bf16.mxu0 %v424
        %456 = vmatpush1.bf16.msra.mxu0 %v423
        %457 = vmatprep.subr.bf16.mxu0 %v426
        %458 = vmatpush1.bf16.msra.mxu0 %v425
        %459 = vmatprep.subr.bf16.mxu0 %v428
        %460 = vmatpush1.bf16.msra.mxu0 %v427
        %461 = vmatprep.subr.bf16.mxu0 %v430
        %462 = vmatpush1.bf16.msra.mxu0 %v429
        %463 = vmatprep.subr.bf16.mxu0 0
        %464 = vmatpush1.bf16.msra.mxu0 0
        %465 = vmatprep.subr.bf16.mxu0 0
        %466 = vmatpush1.bf16.msra.mxu0 0
        %467 = vmatprep.subr.bf16.mxu0 0
        %468 = vmatpush1.bf16.msra.mxu0 0
        %469 = vmatprep.subr.bf16.mxu0 0
        %470 = vmatpush1.bf16.msra.mxu0 0
        %471 = vmatprep.subr.bf16.mxu0 0
        %472 = vmatpush1.bf16.msra.mxu0 0
        %473 = vmatprep.subr.bf16.mxu0 0
        %474 = vmatpush1.bf16.msra.mxu0 0
        %475 = vmatprep.subr.bf16.mxu0 0
        %476 = vmatpush1.bf16.msra.mxu0 0
        %477 = vmatprep.subr.bf16.mxu0 0
        %478 = vmatpush1.bf16.msra.mxu0 0
        %479 = vmatprep.mubr.bf16.mxu0 0
        %480 = vmatmul.mubr.bf16.gmra.mrb[0].mxu0 %v351
        %v481 = vpop.f32.mrb[0].mxu0
        %v482 = vadd.f32 %v312, %v481
        %v483 = vpop.f32.mrb[0].mxu0
        %v484 = vadd.f32 %v316, %v483
        %v485 = vpop.f32.mrb[0].mxu0
        %v486 = vadd.f32 %v312, %v485
        %v487 = vpop.f32.mrb[0].mxu0
        %v488 = vadd.f32 %v316, %v487
        %489 = vmatprep.mubr.bf16.mxu0 0
        %490 = vmatmul.mubr.bf16.gmra.mrb[0].mxu0 %v352
        %v491 = vpop.f32.mrb[0].mxu0
        %v492 = vadd.f32 %v312, %v491
        %v493 = vpop.f32.mrb[0].mxu0
        %v494 = vadd.f32 %v316, %v493
        %v495 = vpop.f32.mrb[0].mxu0
        %v496 = vadd.f32 %v312, %v495
        %v497 = vpop.f32.mrb[0].mxu0
        %v498 = vadd.f32 %v316, %v497
        %499 = vmatprep.mubr.bf16.mxu0 0
        %500 = vmatmul.mubr.bf16.gmra.mrb[0].mxu0 %v353
        %v501 = vpop.f32.mrb[0].mxu0
        %v502 = vadd.f32 %v312, %v501
        %v503 = vpop.f32.mrb[0].mxu0
        %v504 = vadd.f32 %v316, %v503
        %v505 = vpop.f32.mrb[0].mxu0
        %v506 = vadd.f32 %v312, %v505
        %v507 = vpop.f32.mrb[0].mxu0
        %v508 = vadd.f32 %v316, %v507
        %509 = vmatprep.mubr.bf16.mxu0 0
        %510 = vmatmul.mubr.bf16.gmra.mrb[0].mxu0 %v354
        %v511 = vpop.f32.mrb[0].mxu0
        %v512 = vadd.f32 %v312, %v511
        %v513 = vpop.f32.mrb[0].mxu0
        %v514 = vadd.f32 %v316, %v513
        %v515 = vpop.f32.mrb[0].mxu0
        %v516 = vadd.f32 %v312, %v515
        %v517 = vpop.f32.mrb[0].mxu0
        %v518 = vadd.f32 %v316, %v517
        %519 = vmatprep.mubr.bf16.mxu0 0
        %520 = vmatmul.mubr.bf16.gmra.mrb[0].mxu0 %v355
        %v521 = vpop.f32.mrb[0].mxu0
        %v522 = vadd.f32 %v312, %v521
        %v523 = vpop.f32.mrb[0].mxu0
        %v524 = vadd.f32 %v316, %v523
        %v525 = vpop.f32.mrb[0].mxu0
        %v526 = vadd.f32 %v312, %v525
        %v527 = vpop.f32.mrb[0].mxu0
        %v528 = vadd.f32 %v316, %v527
        %529 = vmatprep.mubr.bf16.mxu0 0
        %530 = vmatmul.mubr.bf16.gmra.mrb[0].mxu0 %v356
        %v531 = vpop.f32.mrb[0].mxu0
        %v532 = vadd.f32 %v312, %v531
        %v533 = vpop.f32.mrb[0].mxu0
        %v534 = vadd.f32 %v316, %v533
        %v535 = vpop.f32.mrb[0].mxu0
        %v536 = vadd.f32 %v312, %v535
        %v537 = vpop.f32.mrb[0].mxu0
        %v538 = vadd.f32 %v316, %v537
        %539 = vmatprep.mubr.bf16.mxu0 0
        %540 = vmatmul.mubr.bf16.gmra.mrb[0].mxu0 %v357
        %v541 = vpop.f32.mrb[0].mxu0
        %v542 = vadd.f32 %v312, %v541
        %v543 = vpop.f32.mrb[0].mxu0
        %v544 = vadd.f32 %v316, %v543
        %v545 = vpop.f32.mrb[0].mxu0
        %v546 = vadd.f32 %v312, %v545
        %v547 = vpop.f32.mrb[0].mxu0
        %v548 = vadd.f32 %v316, %v547
        %549 = vmatprep.mubr.bf16.mxu0 0
        %550 = vmatmul.mubr.bf16.gmra.mrb[0].mxu0 %v358
        %v551 = vpop.f32.mrb[0].mxu0
        %v552 = vadd.f32 %v312, %v551
        %v553 = vpop.f32.mrb[0].mxu0
        %v554 = vadd.f32 %v316, %v553
        %v555 = vpop.f32.mrb[0].mxu0
        %v556 = vadd.f32 %v312, %v555
        %v557 = vpop.f32.mrb[0].mxu0
        %v558 = vadd.f32 %v316, %v557
        %559 = vdwg.mxu0
        %v560 = vmul.f32 %v482, 0.5
        %v561 = vmul.f32 %v484, 0.5
        %v562 = vmul.f32 %v486, 0.5
        %v563 = vmul.f32 %v488, 0.5
        %v564 = vmul.f32 %v492, 0.5
        %v565 = vmul.f32 %v494, 0.5
        %v566 = vmul.f32 %v496, 0.5
        %v567 = vmul.f32 %v498, 0.5
        %v568 = vmul.f32 %v502, 0.5
        %v569 = vmul.f32 %v504, 0.5
        %v570 = vmul.f32 %v506, 0.5
        %v571 = vmul.f32 %v508, 0.5
        %v572 = vmul.f32 %v512, 0.5
        %v573 = vmul.f32 %v514, 0.5
        %v574 = vmul.f32 %v516, 0.5
        %v575 = vmul.f32 %v518, 0.5
        %v576 = vmul.f32 %v522, 0.5
        %v577 = vmul.f32 %v524, 0.5
        %v578 = vmul.f32 %v526, 0.5
        %v579 = vmul.f32 %v528, 0.5
        %v580 = vmul.f32 %v532, 0.5
        %v581 = vmul.f32 %v534, 0.5
        %v582 = vmul.f32 %v536, 0.5
        %v583 = vmul.f32 %v538, 0.5
        %v584 = vmul.f32 %v542, 0.5
        %v585 = vmul.f32 %v544, 0.5
        %v586 = vmul.f32 %v546, 0.5
        %v587 = vmul.f32 %v548, 0.5
        %v588 = vmul.f32 %v552, 0.5
        %v589 = vmul.f32 %v554, 0.5
        %v590 = vmul.f32 %v556, 0.5
        %v591 = vmul.f32 %v558, 0.5
        %v592 = vmul.f32 %v482, 0.70710677
        %v593 = vmul.f32 %v484, 0.70710677
        %v594 = vmul.f32 %v486, 0.70710677
        %v595 = vmul.f32 %v488, 0.70710677
        %v596 = vmul.f32 %v492, 0.70710677
        %v597 = vmul.f32 %v494, 0.70710677
        %v598 = vmul.f32 %v496, 0.70710677
        %v599 = vmul.f32 %v498, 0.70710677
        %v600 = vmul.f32 %v502, 0.70710677
        %v601 = vmul.f32 %v504, 0.70710677
        %v602 = vmul.f32 %v506, 0.70710677
        %v603 = vmul.f32 %v508, 0.70710677
        %v604 = vmul.f32 %v512, 0.70710677
        %v605 = vmul.f32 %v514, 0.70710677
        %v606 = vmul.f32 %v516, 0.70710677
        %v607 = vmul.f32 %v518, 0.70710677
        %v608 = vmul.f32 %v522, 0.70710677
        %v609 = vmul.f32 %v524, 0.70710677
        %v610 = vmul.f32 %v526, 0.70710677
        %v611 = vmul.f32 %v528, 0.70710677
        %v612 = vmul.f32 %v532, 0.70710677
        %v613 = vmul.f32 %v534, 0.70710677
        %v614 = vmul.f32 %v536, 0.70710677
        %v615 = vmul.f32 %v538, 0.70710677
        %v616 = vmul.f32 %v542, 0.70710677
        %v617 = vmul.f32 %v544, 0.70710677
        %v618 = vmul.f32 %v546, 0.70710677
        %v619 = vmul.f32 %v548, 0.70710677
        %v620 = vmul.f32 %v552, 0.70710677
        %v621 = vmul.f32 %v554, 0.70710677
        %v622 = vmul.f32 %v556, 0.70710677
        %v623 = vmul.f32 %v558, 0.70710677
        %vm624 = vcmp.ge.f32.partialorder %v592, 0.0
        %vm625 = vcmp.ge.f32.partialorder %v593, 0.0
        %vm626 = vcmp.ge.f32.partialorder %v594, 0.0
        %vm627 = vcmp.ge.f32.partialorder %v595, 0.0
        %vm628 = vcmp.ge.f32.partialorder %v596, 0.0
        %vm629 = vcmp.ge.f32.partialorder %v597, 0.0
        %vm630 = vcmp.ge.f32.partialorder %v598, 0.0
        %vm631 = vcmp.ge.f32.partialorder %v599, 0.0
        %vm632 = vcmp.ge.f32.partialorder %v600, 0.0
        %vm633 = vcmp.ge.f32.partialorder %v601, 0.0
        %vm634 = vcmp.ge.f32.partialorder %v602, 0.0
        %vm635 = vcmp.ge.f32.partialorder %v603, 0.0
        %vm636 = vcmp.ge.f32.partialorder %v604, 0.0
        %vm637 = vcmp.ge.f32.partialorder %v605, 0.0
        %vm638 = vcmp.ge.f32.partialorder %v606, 0.0
        %vm639 = vcmp.ge.f32.partialorder %v607, 0.0
        %vm640 = vcmp.ge.f32.partialorder %v608, 0.0
        %vm641 = vcmp.ge.f32.partialorder %v609, 0.0
        %vm642 = vcmp.ge.f32.partialorder %v610, 0.0
        %vm643 = vcmp.ge.f32.partialorder %v611, 0.0
        %vm644 = vcmp.ge.f32.partialorder %v612, 0.0
        %vm645 = vcmp.ge.f32.partialorder %v613, 0.0
        %vm646 = vcmp.ge.f32.partialorder %v614, 0.0
        %vm647 = vcmp.ge.f32.partialorder %v615, 0.0
        %vm648 = vcmp.ge.f32.partialorder %v616, 0.0
        %vm649 = vcmp.ge.f32.partialorder %v617, 0.0
        %vm650 = vcmp.ge.f32.partialorder %v618, 0.0
        %vm651 = vcmp.ge.f32.partialorder %v619, 0.0
        %vm652 = vcmp.ge.f32.partialorder %v620, 0.0
        %vm653 = vcmp.ge.f32.partialorder %v621, 0.0
        %vm654 = vcmp.ge.f32.partialorder %v622, 0.0
        %vm655 = vcmp.ge.f32.partialorder %v623, 0.0
        %v656 = vsel %vm624, 1.0, -1.0
        %v657 = vsel %vm625, 1.0, -1.0
        %v658 = vsel %vm626, 1.0, -1.0
        %v659 = vsel %vm627, 1.0, -1.0
        %v660 = vsel %vm628, 1.0, -1.0
        %v661 = vsel %vm629, 1.0, -1.0
        %v662 = vsel %vm630, 1.0, -1.0
        %v663 = vsel %vm631, 1.0, -1.0
        %v664 = vsel %vm632, 1.0, -1.0
        %v665 = vsel %vm633, 1.0, -1.0
        %v666 = vsel %vm634, 1.0, -1.0
        %v667 = vsel %vm635, 1.0, -1.0
        %v668 = vsel %vm636, 1.0, -1.0
        %v669 = vsel %vm637, 1.0, -1.0
        %v670 = vsel %vm638, 1.0, -1.0
        %v671 = vsel %vm639, 1.0, -1.0
        %v672 = vsel %vm640, 1.0, -1.0
        %v673 = vsel %vm641, 1.0, -1.0
        %v674 = vsel %vm642, 1.0, -1.0
        %v675 = vsel %vm643, 1.0, -1.0
        %v676 = vsel %vm644, 1.0, -1.0
        %v677 = vsel %vm645, 1.0, -1.0
        %v678 = vsel %vm646, 1.0, -1.0
        %v679 = vsel %vm647, 1.0, -1.0
        %v680 = vsel %vm648, 1.0, -1.0
        %v681 = vsel %vm649, 1.0, -1.0
        %v682 = vsel %vm650, 1.0, -1.0
        %v683 = vsel %vm651, 1.0, -1.0
        %v684 = vsel %vm652, 1.0, -1.0
        %v685 = vsel %vm653, 1.0, -1.0
        %v686 = vsel %vm654, 1.0, -1.0
        %v687 = vsel %vm655, 1.0, -1.0
        %v688 = vand.u32 2147483647, %v592
        %v689 = vand.u32 2147483647, %v593
        %v690 = vand.u32 2147483647, %v594
        %v691 = vand.u32 2147483647, %v595
        %v692 = vand.u32 2147483647, %v596
        %v693 = vand.u32 2147483647, %v597
        %v694 = vand.u32 2147483647, %v598
        %v695 = vand.u32 2147483647, %v599
        %v696 = vand.u32 2147483647, %v600
        %v697 = vand.u32 2147483647, %v601
        %v698 = vand.u32 2147483647, %v602
        %v699 = vand.u32 2147483647, %v603
        %v700 = vand.u32 2147483647, %v604
        %v701 = vand.u32 2147483647, %v605
        %v702 = vand.u32 2147483647, %v606
        %v703 = vand.u32 2147483647, %v607
        %v704 = vand.u32 2147483647, %v608
        %v705 = vand.u32 2147483647, %v609
        %v706 = vand.u32 2147483647, %v610
        %v707 = vand.u32 2147483647, %v611
        %v708 = vand.u32 2147483647, %v612
        %v709 = vand.u32 2147483647, %v613
        %v710 = vand.u32 2147483647, %v614
        %v711 = vand.u32 2147483647, %v615
        %v712 = vand.u32 2147483647, %v616
        %v713 = vand.u32 2147483647, %v617
        %v714 = vand.u32 2147483647, %v618
        %v715 = vand.u32 2147483647, %v619
        %v716 = vand.u32 2147483647, %v620
        %v717 = vand.u32 2147483647, %v621
        %v718 = vand.u32 2147483647, %v622
        %v719 = vand.u32 2147483647, %v623
        %v720 = vmul.f32 %v688, 0.3275911
        %v721 = vmul.f32 %v689, 0.3275911
        %v722 = vmul.f32 %v690, 0.3275911
        %v723 = vmul.f32 %v691, 0.3275911
        %v724 = vmul.f32 %v692, 0.3275911
        %v725 = vmul.f32 %v693, 0.3275911
        %v726 = vmul.f32 %v694, 0.3275911
        %v727 = vmul.f32 %v695, 0.3275911
        %v728 = vmul.f32 %v696, 0.3275911
        %v729 = vmul.f32 %v697, 0.3275911
        %v730 = vmul.f32 %v698, 0.3275911
        %v731 = vmul.f32 %v699, 0.3275911
        %v732 = vmul.f32 %v700, 0.3275911
        %v733 = vmul.f32 %v701, 0.3275911
        %v734 = vmul.f32 %v702, 0.3275911
        %v735 = vmul.f32 %v703, 0.3275911
        %v736 = vmul.f32 %v704, 0.3275911
        %v737 = vmul.f32 %v705, 0.3275911
        %v738 = vmul.f32 %v706, 0.3275911
        %v739 = vmul.f32 %v707, 0.3275911
        %v740 = vmul.f32 %v708, 0.3275911
        %v741 = vmul.f32 %v709, 0.3275911
        %v742 = vmul.f32 %v710, 0.3275911
        %v743 = vmul.f32 %v711, 0.3275911
        %v744 = vmul.f32 %v712, 0.3275911
        %v745 = vmul.f32 %v713, 0.3275911
        %v746 = vmul.f32 %v714, 0.3275911
        %v747 = vmul.f32 %v715, 0.3275911
        %v748 = vmul.f32 %v716, 0.3275911
        %v749 = vmul.f32 %v717, 0.3275911
        %v750 = vmul.f32 %v718, 0.3275911
        %v751 = vmul.f32 %v719, 0.3275911
        %v752 = vadd.f32 %v720, 1.0
        %v753 = vadd.f32 %v721, 1.0
        %v754 = vadd.f32 %v722, 1.0
        %v755 = vadd.f32 %v723, 1.0
        %v756 = vadd.f32 %v724, 1.0
        %v757 = vadd.f32 %v725, 1.0
        %v758 = vadd.f32 %v726, 1.0
        %v759 = vadd.f32 %v727, 1.0
        %v760 = vadd.f32 %v728, 1.0
        %v761 = vadd.f32 %v729, 1.0
        %v762 = vadd.f32 %v730, 1.0
        %v763 = vadd.f32 %v731, 1.0
        %v764 = vadd.f32 %v732, 1.0
        %v765 = vadd.f32 %v733, 1.0
        %v766 = vadd.f32 %v734, 1.0
        %v767 = vadd.f32 %v735, 1.0
        %v768 = vadd.f32 %v736, 1.0
        %v769 = vadd.f32 %v737, 1.0
        %v770 = vadd.f32 %v738, 1.0
        %v771 = vadd.f32 %v739, 1.0
        %v772 = vadd.f32 %v740, 1.0
        %v773 = vadd.f32 %v741, 1.0
        %v774 = vadd.f32 %v742, 1.0
        %v775 = vadd.f32 %v743, 1.0
        %v776 = vadd.f32 %v744, 1.0
        %v777 = vadd.f32 %v745, 1.0
        %v778 = vadd.f32 %v746, 1.0
        %v779 = vadd.f32 %v747, 1.0
        %v780 = vadd.f32 %v748, 1.0
        %v781 = vadd.f32 %v749, 1.0
        %v782 = vadd.f32 %v750, 1.0
        %v783 = vadd.f32 %v751, 1.0
        %v784 = vrcp.pop %v752
        %v785 = vmul.f32 1.0, %v784
        %v786 = vrcp.pop %v753
        %v787 = vmul.f32 1.0, %v786
        %v788 = vrcp.pop %v754
        %v789 = vmul.f32 1.0, %v788
        %v790 = vrcp.pop %v755
        %v791 = vmul.f32 1.0, %v790
        %v792 = vrcp.pop %v756
        %v793 = vmul.f32 1.0, %v792
        %v794 = vrcp.pop %v757
        %v795 = vmul.f32 1.0, %v794
        %v796 = vrcp.pop %v758
        %v797 = vmul.f32 1.0, %v796
        %v798 = vrcp.pop %v759
        %v799 = vmul.f32 1.0, %v798
        %v800 = vrcp.pop %v760
        %v801 = vmul.f32 1.0, %v800
        %v802 = vrcp.pop %v761
        %v803 = vmul.f32 1.0, %v802
        %v804 = vrcp.pop %v762
        %v805 = vmul.f32 1.0, %v804
        %v806 = vrcp.pop %v763
        %v807 = vmul.f32 1.0, %v806
        %v808 = vrcp.pop %v764
        %v809 = vmul.f32 1.0, %v808
        %v810 = vrcp.pop %v765
        %v811 = vmul.f32 1.0, %v810
        %v812 = vrcp.pop %v766
        %v813 = vmul.f32 1.0, %v812
        %v814 = vrcp.pop %v767
        %v815 = vmul.f32 1.0, %v814
        %v816 = vrcp.pop %v768
        %v817 = vmul.f32 1.0, %v816
        %v818 = vrcp.pop %v769
        %v819 = vmul.f32 1.0, %v818
        %v820 = vrcp.pop %v770
        %v821 = vmul.f32 1.0, %v820
        %v822 = vrcp.pop %v771
        %v823 = vmul.f32 1.0, %v822
        %v824 = vrcp.pop %v772
        %v825 = vmul.f32 1.0, %v824
        %v826 = vrcp.pop %v773
        %v827 = vmul.f32 1.0, %v826
        %v828 = vrcp.pop %v774
        %v829 = vmul.f32 1.0, %v828
        %v830 = vrcp.pop %v775
        %v831 = vmul.f32 1.0, %v830
        %v832 = vrcp.pop %v776
        %v833 = vmul.f32 1.0, %v832
        %v834 = vrcp.pop %v777
        %v835 = vmul.f32 1.0, %v834
        %v836 = vrcp.pop %v778
        %v837 = vmul.f32 1.0, %v836
        %v838 = vrcp.pop %v779
        %v839 = vmul.f32 1.0, %v838
        %v840 = vrcp.pop %v780
        %v841 = vmul.f32 1.0, %v840
        %v842 = vrcp.pop %v781
        %v843 = vmul.f32 1.0, %v842
        %v844 = vrcp.pop %v782
        %v845 = vmul.f32 1.0, %v844
        %v846 = vrcp.pop %v783
        %v847 = vmul.f32 1.0, %v846
        %v848 = vmul.f32 %v785, 1.0614054
        %v849 = vmul.f32 %v787, 1.0614054
        %v850 = vmul.f32 %v789, 1.0614054
        %v851 = vmul.f32 %v791, 1.0614054
        %v852 = vmul.f32 %v793, 1.0614054
        %v853 = vmul.f32 %v795, 1.0614054
        %v854 = vmul.f32 %v797, 1.0614054
        %v855 = vmul.f32 %v799, 1.0614054
        %v856 = vmul.f32 %v801, 1.0614054
        %v857 = vmul.f32 %v803, 1.0614054
        %v858 = vmul.f32 %v805, 1.0614054
        %v859 = vmul.f32 %v807, 1.0614054
        %v860 = vmul.f32 %v809, 1.0614054
        %v861 = vmul.f32 %v811, 1.0614054
        %v862 = vmul.f32 %v813, 1.0614054
        %v863 = vmul.f32 %v815, 1.0614054
        %v864 = vmul.f32 %v817, 1.0614054
        %v865 = vmul.f32 %v819, 1.0614054
        %v866 = vmul.f32 %v821, 1.0614054
        %v867 = vmul.f32 %v823, 1.0614054
        %v868 = vmul.f32 %v825, 1.0614054
        %v869 = vmul.f32 %v827, 1.0614054
        %v870 = vmul.f32 %v829, 1.0614054
        %v871 = vmul.f32 %v831, 1.0614054
        %v872 = vmul.f32 %v833, 1.0614054
        %v873 = vmul.f32 %v835, 1.0614054
        %v874 = vmul.f32 %v837, 1.0614054
        %v875 = vmul.f32 %v839, 1.0614054
        %v876 = vmul.f32 %v841, 1.0614054
        %v877 = vmul.f32 %v843, 1.0614054
        %v878 = vmul.f32 %v845, 1.0614054
        %v879 = vmul.f32 %v847, 1.0614054
        %v880 = vadd.f32 %v848, -1.4531521
        %v881 = vadd.f32 %v849, -1.4531521
        %v882 = vadd.f32 %v850, -1.4531521
        %v883 = vadd.f32 %v851, -1.4531521
        %v884 = vadd.f32 %v852, -1.4531521
        %v885 = vadd.f32 %v853, -1.4531521
        %v886 = vadd.f32 %v854, -1.4531521
        %v887 = vadd.f32 %v855, -1.4531521
        %v888 = vadd.f32 %v856, -1.4531521
        %v889 = vadd.f32 %v857, -1.4531521
        %v890 = vadd.f32 %v858, -1.4531521
        %v891 = vadd.f32 %v859, -1.4531521
        %v892 = vadd.f32 %v860, -1.4531521
        %v893 = vadd.f32 %v861, -1.4531521
        %v894 = vadd.f32 %v862, -1.4531521
        %v895 = vadd.f32 %v863, -1.4531521
        %v896 = vadd.f32 %v864, -1.4531521
        %v897 = vadd.f32 %v865, -1.4531521
        %v898 = vadd.f32 %v866, -1.4531521
        %v899 = vadd.f32 %v867, -1.4531521
        %v900 = vadd.f32 %v868, -1.4531521
        %v901 = vadd.f32 %v869, -1.4531521
        %v902 = vadd.f32 %v870, -1.4531521
        %v903 = vadd.f32 %v871, -1.4531521
        %v904 = vadd.f32 %v872, -1.4531521
        %v905 = vadd.f32 %v873, -1.4531521
        %v906 = vadd.f32 %v874, -1.4531521
        %v907 = vadd.f32 %v875, -1.4531521
        %v908 = vadd.f32 %v876, -1.4531521
        %v909 = vadd.f32 %v877, -1.4531521
        %v910 = vadd.f32 %v878, -1.4531521
        %v911 = vadd.f32 %v879, -1.4531521
        %v912 = vmul.f32 %v785, %v880
        %v913 = vmul.f32 %v787, %v881
        %v914 = vmul.f32 %v789, %v882
        %v915 = vmul.f32 %v791, %v883
        %v916 = vmul.f32 %v793, %v884
        %v917 = vmul.f32 %v795, %v885
        %v918 = vmul.f32 %v797, %v886
        %v919 = vmul.f32 %v799, %v887
        %v920 = vmul.f32 %v801, %v888
        %v921 = vmul.f32 %v803, %v889
        %v922 = vmul.f32 %v805, %v890
        %v923 = vmul.f32 %v807, %v891
        %v924 = vmul.f32 %v809, %v892
        %v925 = vmul.f32 %v811, %v893
        %v926 = vmul.f32 %v813, %v894
        %v927 = vmul.f32 %v815, %v895
        %v928 = vmul.f32 %v817, %v896
        %v929 = vmul.f32 %v819, %v897
        %v930 = vmul.f32 %v821, %v898
        %v931 = vmul.f32 %v823, %v899
        %v932 = vmul.f32 %v825, %v900
        %v933 = vmul.f32 %v827, %v901
        %v934 = vmul.f32 %v829, %v902
        %v935 = vmul.f32 %v831, %v903
        %v936 = vmul.f32 %v833, %v904
        %v937 = vmul.f32 %v835, %v905
        %v938 = vmul.f32 %v837, %v906
        %v939 = vmul.f32 %v839, %v907
        %v940 = vmul.f32 %v841, %v908
        %v941 = vmul.f32 %v843, %v909
        %v942 = vmul.f32 %v845, %v910
        %v943 = vmul.f32 %v847, %v911
        %v944 = vadd.f32 %v912, 1.4214138
        %v945 = vadd.f32 %v913, 1.4214138
        %v946 = vadd.f32 %v914, 1.4214138
        %v947 = vadd.f32 %v915, 1.4214138
        %v948 = vadd.f32 %v916, 1.4214138
        %v949 = vadd.f32 %v917, 1.4214138
        %v950 = vadd.f32 %v918, 1.4214138
        %v951 = vadd.f32 %v919, 1.4214138
        %v952 = vadd.f32 %v920, 1.4214138
        %v953 = vadd.f32 %v921, 1.4214138
        %v954 = vadd.f32 %v922, 1.4214138
        %v955 = vadd.f32 %v923, 1.4214138
        %v956 = vadd.f32 %v924, 1.4214138
        %v957 = vadd.f32 %v925, 1.4214138
        %v958 = vadd.f32 %v926, 1.4214138
        %v959 = vadd.f32 %v927, 1.4214138
        %v960 = vadd.f32 %v928, 1.4214138
        %v961 = vadd.f32 %v929, 1.4214138
        %v962 = vadd.f32 %v930, 1.4214138
        %v963 = vadd.f32 %v931, 1.4214138
        %v964 = vadd.f32 %v932, 1.4214138
        %v965 = vadd.f32 %v933, 1.4214138
        %v966 = vadd.f32 %v934, 1.4214138
        %v967 = vadd.f32 %v935, 1.4214138
        %v968 = vadd.f32 %v936, 1.4214138
        %v969 = vadd.f32 %v937, 1.4214138
        %v970 = vadd.f32 %v938, 1.4214138
        %v971 = vadd.f32 %v939, 1.4214138
        %v972 = vadd.f32 %v940, 1.4214138
        %v973 = vadd.f32 %v941, 1.4214138
        %v974 = vadd.f32 %v942, 1.4214138
        %v975 = vadd.f32 %v943, 1.4214138
        %v976 = vmul.f32 %v785, %v944
        %v977 = vmul.f32 %v787, %v945
        %v978 = vmul.f32 %v789, %v946
        %v979 = vmul.f32 %v791, %v947
        %v980 = vmul.f32 %v793, %v948
        %v981 = vmul.f32 %v795, %v949
        %v982 = vmul.f32 %v797, %v950
        %v983 = vmul.f32 %v799, %v951
        %v984 = vmul.f32 %v801, %v952
        %v985 = vmul.f32 %v803, %v953
        %v986 = vmul.f32 %v805, %v954
        %v987 = vmul.f32 %v807, %v955
        %v988 = vmul.f32 %v809, %v956
        %v989 = vmul.f32 %v811, %v957
        %v990 = vmul.f32 %v813, %v958
        %v991 = vmul.f32 %v815, %v959
        %v992 = vmul.f32 %v817, %v960
        %v993 = vmul.f32 %v819, %v961
        %v994 = vmul.f32 %v821, %v962
        %v995 = vmul.f32 %v823, %v963
        %v996 = vmul.f32 %v825, %v964
        %v997 = vmul.f32 %v827, %v965
        %v998 = vmul.f32 %v829, %v966
        %v999 = vmul.f32 %v831, %v967
        %v1000 = vmul.f32 %v833, %v968
        %v1001 = vmul.f32 %v835, %v969
        %v1002 = vmul.f32 %v837, %v970
        %v1003 = vmul.f32 %v839, %v971
        %v1004 = vmul.f32 %v841, %v972
        %v1005 = vmul.f32 %v843, %v973
        %v1006 = vmul.f32 %v845, %v974
        %v1007 = vmul.f32 %v847, %v975
        %v1008 = vadd.f32 %v976, -0.28449672
        %v1009 = vadd.f32 %v977, -0.28449672
        %v1010 = vadd.f32 %v978, -0.28449672
        %v1011 = vadd.f32 %v979, -0.28449672
        %v1012 = vadd.f32 %v980, -0.28449672
        %v1013 = vadd.f32 %v981, -0.28449672
        %v1014 = vadd.f32 %v982, -0.28449672
        %v1015 = vadd.f32 %v983, -0.28449672
        %v1016 = vadd.f32 %v984, -0.28449672
        %v1017 = vadd.f32 %v985, -0.28449672
        %v1018 = vadd.f32 %v986, -0.28449672
        %v1019 = vadd.f32 %v987, -0.28449672
        %v1020 = vadd.f32 %v988, -0.28449672
        %v1021 = vadd.f32 %v989, -0.28449672
        %v1022 = vadd.f32 %v990, -0.28449672
        %v1023 = vadd.f32 %v991, -0.28449672
        %v1024 = vadd.f32 %v992, -0.28449672
        %v1025 = vadd.f32 %v993, -0.28449672
        %v1026 = vadd.f32 %v994, -0.28449672
        %v1027 = vadd.f32 %v995, -0.28449672
        %v1028 = vadd.f32 %v996, -0.28449672
        %v1029 = vadd.f32 %v997, -0.28449672
        %v1030 = vadd.f32 %v998, -0.28449672
        %v1031 = vadd.f32 %v999, -0.28449672
        %v1032 = vadd.f32 %v1000, -0.28449672
        %v1033 = vadd.f32 %v1001, -0.28449672
        %v1034 = vadd.f32 %v1002, -0.28449672
        %v1035 = vadd.f32 %v1003, -0.28449672
        %v1036 = vadd.f32 %v1004, -0.28449672
        %v1037 = vadd.f32 %v1005, -0.28449672
        %v1038 = vadd.f32 %v1006, -0.28449672
        %v1039 = vadd.f32 %v1007, -0.28449672
        %v1040 = vmul.f32 %v785, %v1008
        %v1041 = vmul.f32 %v787, %v1009
        %v1042 = vmul.f32 %v789, %v1010
        %v1043 = vmul.f32 %v791, %v1011
        %v1044 = vmul.f32 %v793, %v1012
        %v1045 = vmul.f32 %v795, %v1013
        %v1046 = vmul.f32 %v797, %v1014
        %v1047 = vmul.f32 %v799, %v1015
        %v1048 = vmul.f32 %v801, %v1016
        %v1049 = vmul.f32 %v803, %v1017
        %v1050 = vmul.f32 %v805, %v1018
        %v1051 = vmul.f32 %v807, %v1019
        %v1052 = vmul.f32 %v809, %v1020
        %v1053 = vmul.f32 %v811, %v1021
        %v1054 = vmul.f32 %v813, %v1022
        %v1055 = vmul.f32 %v815, %v1023
        %v1056 = vmul.f32 %v817, %v1024
        %v1057 = vmul.f32 %v819, %v1025
        %v1058 = vmul.f32 %v821, %v1026
        %v1059 = vmul.f32 %v823, %v1027
        %v1060 = vmul.f32 %v825, %v1028
        %v1061 = vmul.f32 %v827, %v1029
        %v1062 = vmul.f32 %v829, %v1030
        %v1063 = vmul.f32 %v831, %v1031
        %v1064 = vmul.f32 %v833, %v1032
        %v1065 = vmul.f32 %v835, %v1033
        %v1066 = vmul.f32 %v837, %v1034
        %v1067 = vmul.f32 %v839, %v1035
        %v1068 = vmul.f32 %v841, %v1036
        %v1069 = vmul.f32 %v843, %v1037
        %v1070 = vmul.f32 %v845, %v1038
        %v1071 = vmul.f32 %v847, %v1039
        %v1072 = vadd.f32 %v1040, 0.2548296
        %v1073 = vadd.f32 %v1041, 0.2548296
        %v1074 = vadd.f32 %v1042, 0.2548296
        %v1075 = vadd.f32 %v1043, 0.2548296
        %v1076 = vadd.f32 %v1044, 0.2548296
        %v1077 = vadd.f32 %v1045, 0.2548296
        %v1078 = vadd.f32 %v1046, 0.2548296
        %v1079 = vadd.f32 %v1047, 0.2548296
        %v1080 = vadd.f32 %v1048, 0.2548296
        %v1081 = vadd.f32 %v1049, 0.2548296
        %v1082 = vadd.f32 %v1050, 0.2548296
        %v1083 = vadd.f32 %v1051, 0.2548296
        %v1084 = vadd.f32 %v1052, 0.2548296
        %v1085 = vadd.f32 %v1053, 0.2548296
        %v1086 = vadd.f32 %v1054, 0.2548296
        %v1087 = vadd.f32 %v1055, 0.2548296
        %v1088 = vadd.f32 %v1056, 0.2548296
        %v1089 = vadd.f32 %v1057, 0.2548296
        %v1090 = vadd.f32 %v1058, 0.2548296
        %v1091 = vadd.f32 %v1059, 0.2548296
        %v1092 = vadd.f32 %v1060, 0.2548296
        %v1093 = vadd.f32 %v1061, 0.2548296
        %v1094 = vadd.f32 %v1062, 0.2548296
        %v1095 = vadd.f32 %v1063, 0.2548296
        %v1096 = vadd.f32 %v1064, 0.2548296
        %v1097 = vadd.f32 %v1065, 0.2548296
        %v1098 = vadd.f32 %v1066, 0.2548296
        %v1099 = vadd.f32 %v1067, 0.2548296
        %v1100 = vadd.f32 %v1068, 0.2548296
        %v1101 = vadd.f32 %v1069, 0.2548296
        %v1102 = vadd.f32 %v1070, 0.2548296
        %v1103 = vadd.f32 %v1071, 0.2548296
        %v1104 = vmul.f32 %v785, %v1072
        %v1105 = vmul.f32 %v787, %v1073
        %v1106 = vmul.f32 %v789, %v1074
        %v1107 = vmul.f32 %v791, %v1075
        %v1108 = vmul.f32 %v793, %v1076
        %v1109 = vmul.f32 %v795, %v1077
        %v1110 = vmul.f32 %v797, %v1078
        %v1111 = vmul.f32 %v799, %v1079
        %v1112 = vmul.f32 %v801, %v1080
        %v1113 = vmul.f32 %v803, %v1081
        %v1114 = vmul.f32 %v805, %v1082
        %v1115 = vmul.f32 %v807, %v1083
        %v1116 = vmul.f32 %v809, %v1084
        %v1117 = vmul.f32 %v811, %v1085
        %v1118 = vmul.f32 %v813, %v1086
        %v1119 = vmul.f32 %v815, %v1087
        %v1120 = vmul.f32 %v817, %v1088
        %v1121 = vmul.f32 %v819, %v1089
        %v1122 = vmul.f32 %v821, %v1090
        %v1123 = vmul.f32 %v823, %v1091
        %v1124 = vmul.f32 %v825, %v1092
        %v1125 = vmul.f32 %v827, %v1093
        %v1126 = vmul.f32 %v829, %v1094
        %v1127 = vmul.f32 %v831, %v1095
        %v1128 = vmul.f32 %v833, %v1096
        %v1129 = vmul.f32 %v835, %v1097
        %v1130 = vmul.f32 %v837, %v1098
        %v1131 = vmul.f32 %v839, %v1099
        %v1132 = vmul.f32 %v841, %v1100
        %v1133 = vmul.f32 %v843, %v1101
        %v1134 = vmul.f32 %v845, %v1102
        %v1135 = vmul.f32 %v847, %v1103
        %v1136 = vsub.f32 0.0, %v688
        %v1137 = vsub.f32 0.0, %v689
        %v1138 = vsub.f32 0.0, %v690
        %v1139 = vsub.f32 0.0, %v691
        %v1140 = vsub.f32 0.0, %v692
        %v1141 = vsub.f32 0.0, %v693
        %v1142 = vsub.f32 0.0, %v694
        %v1143 = vsub.f32 0.0, %v695
        %v1144 = vsub.f32 0.0, %v696
        %v1145 = vsub.f32 0.0, %v697
        %v1146 = vsub.f32 0.0, %v698
        %v1147 = vsub.f32 0.0, %v699
        %v1148 = vsub.f32 0.0, %v700
        %v1149 = vsub.f32 0.0, %v701
        %v1150 = vsub.f32 0.0, %v702
        %v1151 = vsub.f32 0.0, %v703
        %v1152 = vsub.f32 0.0, %v704
        %v1153 = vsub.f32 0.0, %v705
        %v1154 = vsub.f32 0.0, %v706
        %v1155 = vsub.f32 0.0, %v707
        %v1156 = vsub.f32 0.0, %v708
        %v1157 = vsub.f32 0.0, %v709
        %v1158 = vsub.f32 0.0, %v710
        %v1159 = vsub.f32 0.0, %v711
        %v1160 = vsub.f32 0.0, %v712
        %v1161 = vsub.f32 0.0, %v713
        %v1162 = vsub.f32 0.0, %v714
        %v1163 = vsub.f32 0.0, %v715
        %v1164 = vsub.f32 0.0, %v716
        %v1165 = vsub.f32 0.0, %v717
        %v1166 = vsub.f32 0.0, %v718
        %v1167 = vsub.f32 0.0, %v719
        %v1168 = vmul.f32 %v1136, %v688
        %v1169 = vmul.f32 %v1137, %v689
        %v1170 = vmul.f32 %v1138, %v690
        %v1171 = vmul.f32 %v1139, %v691
        %v1172 = vmul.f32 %v1140, %v692
        %v1173 = vmul.f32 %v1141, %v693
        %v1174 = vmul.f32 %v1142, %v694
        %v1175 = vmul.f32 %v1143, %v695
        %v1176 = vmul.f32 %v1144, %v696
        %v1177 = vmul.f32 %v1145, %v697
        %v1178 = vmul.f32 %v1146, %v698
        %v1179 = vmul.f32 %v1147, %v699
        %v1180 = vmul.f32 %v1148, %v700
        %v1181 = vmul.f32 %v1149, %v701
        %v1182 = vmul.f32 %v1150, %v702
        %v1183 = vmul.f32 %v1151, %v703
        %v1184 = vmul.f32 %v1152, %v704
        %v1185 = vmul.f32 %v1153, %v705
        %v1186 = vmul.f32 %v1154, %v706
        %v1187 = vmul.f32 %v1155, %v707
        %v1188 = vmul.f32 %v1156, %v708
        %v1189 = vmul.f32 %v1157, %v709
        %v1190 = vmul.f32 %v1158, %v710
        %v1191 = vmul.f32 %v1159, %v711
        %v1192 = vmul.f32 %v1160, %v712
        %v1193 = vmul.f32 %v1161, %v713
        %v1194 = vmul.f32 %v1162, %v714
        %v1195 = vmul.f32 %v1163, %v715
        %v1196 = vmul.f32 %v1164, %v716
        %v1197 = vmul.f32 %v1165, %v717
        %v1198 = vmul.f32 %v1166, %v718
        %v1199 = vmul.f32 %v1167, %v719
        %v1200 = vmul.f32 %v1168, 1.442695
        %v1201 = vpow.pop %v1200
        %v1202 = vmul.f32 %v1169, 1.442695
        %v1203 = vpow.pop %v1202
        %v1204 = vmul.f32 %v1170, 1.442695
        %v1205 = vpow.pop %v1204
        %v1206 = vmul.f32 %v1171, 1.442695
        %v1207 = vpow.pop %v1206
        %v1208 = vmul.f32 %v1172, 1.442695
        %v1209 = vpow.pop %v1208
        %v1210 = vmul.f32 %v1173, 1.442695
        %v1211 = vpow.pop %v1210
        %v1212 = vmul.f32 %v1174, 1.442695
        %v1213 = vpow.pop %v1212
        %v1214 = vmul.f32 %v1175, 1.442695
        %v1215 = vpow.pop %v1214
        %v1216 = vmul.f32 %v1176, 1.442695
        %v1217 = vpow.pop %v1216
        %v1218 = vmul.f32 %v1177, 1.442695
        %v1219 = vpow.pop %v1218
        %v1220 = vmul.f32 %v1178, 1.442695
        %v1221 = vpow.pop %v1220
        %v1222 = vmul.f32 %v1179, 1.442695
        %v1223 = vpow.pop %v1222
        %v1224 = vmul.f32 %v1180, 1.442695
        %v1225 = vpow.pop %v1224
        %v1226 = vmul.f32 %v1181, 1.442695
        %v1227 = vpow.pop %v1226
        %v1228 = vmul.f32 %v1182, 1.442695
        %v1229 = vpow.pop %v1228
        %v1230 = vmul.f32 %v1183, 1.442695
        %v1231 = vpow.pop %v1230
        %v1232 = vmul.f32 %v1184, 1.442695
        %v1233 = vpow.pop %v1232
        %v1234 = vmul.f32 %v1185, 1.442695
        %v1235 = vpow.pop %v1234
        %v1236 = vmul.f32 %v1186, 1.442695
        %v1237 = vpow.pop %v1236
        %v1238 = vmul.f32 %v1187, 1.442695
        %v1239 = vpow.pop %v1238
        %v1240 = vmul.f32 %v1188, 1.442695
        %v1241 = vpow.pop %v1240
        %v1242 = vmul.f32 %v1189, 1.442695
        %v1243 = vpow.pop %v1242
        %v1244 = vmul.f32 %v1190, 1.442695
        %v1245 = vpow.pop %v1244
        %v1246 = vmul.f32 %v1191, 1.442695
        %v1247 = vpow.pop %v1246
        %v1248 = vmul.f32 %v1192, 1.442695
        %v1249 = vpow.pop %v1248
        %v1250 = vmul.f32 %v1193, 1.442695
        %v1251 = vpow.pop %v1250
        %v1252 = vmul.f32 %v1194, 1.442695
        %v1253 = vpow.pop %v1252
        %v1254 = vmul.f32 %v1195, 1.442695
        %v1255 = vpow.pop %v1254
        %v1256 = vmul.f32 %v1196, 1.442695
        %v1257 = vpow.pop %v1256
        %v1258 = vmul.f32 %v1197, 1.442695
        %v1259 = vpow.pop %v1258
        %v1260 = vmul.f32 %v1198, 1.442695
        %v1261 = vpow.pop %v1260
        %v1262 = vmul.f32 %v1199, 1.442695
        %v1263 = vpow.pop %v1262
        %v1264 = vmul.f32 %v1104, %v1201
        %v1265 = vmul.f32 %v1105, %v1203
        %v1266 = vmul.f32 %v1106, %v1205
        %v1267 = vmul.f32 %v1107, %v1207
        %v1268 = vmul.f32 %v1108, %v1209
        %v1269 = vmul.f32 %v1109, %v1211
        %v1270 = vmul.f32 %v1110, %v1213
        %v1271 = vmul.f32 %v1111, %v1215
        %v1272 = vmul.f32 %v1112, %v1217
        %v1273 = vmul.f32 %v1113, %v1219
        %v1274 = vmul.f32 %v1114, %v1221
        %v1275 = vmul.f32 %v1115, %v1223
        %v1276 = vmul.f32 %v1116, %v1225
        %v1277 = vmul.f32 %v1117, %v1227
        %v1278 = vmul.f32 %v1118, %v1229
        %v1279 = vmul.f32 %v1119, %v1231
        %v1280 = vmul.f32 %v1120, %v1233
        %v1281 = vmul.f32 %v1121, %v1235
        %v1282 = vmul.f32 %v1122, %v1237
        %v1283 = vmul.f32 %v1123, %v1239
        %v1284 = vmul.f32 %v1124, %v1241
        %v1285 = vmul.f32 %v1125, %v1243
        %v1286 = vmul.f32 %v1126, %v1245
        %v1287 = vmul.f32 %v1127, %v1247
        %v1288 = vmul.f32 %v1128, %v1249
        %v1289 = vmul.f32 %v1129, %v1251
        %v1290 = vmul.f32 %v1130, %v1253
        %v1291 = vmul.f32 %v1131, %v1255
        %v1292 = vmul.f32 %v1132, %v1257
        %v1293 = vmul.f32 %v1133, %v1259
        %v1294 = vmul.f32 %v1134, %v1261
        %v1295 = vmul.f32 %v1135, %v1263
        %v1296 = vsub.f32 1.0, %v1264
        %v1297 = vsub.f32 1.0, %v1265
        %v1298 = vsub.f32 1.0, %v1266
        %v1299 = vsub.f32 1.0, %v1267
        %v1300 = vsub.f32 1.0, %v1268
        %v1301 = vsub.f32 1.0, %v1269
        %v1302 = vsub.f32 1.0, %v1270
        %v1303 = vsub.f32 1.0, %v1271
        %v1304 = vsub.f32 1.0, %v1272
        %v1305 = vsub.f32 1.0, %v1273
        %v1306 = vsub.f32 1.0, %v1274
        %v1307 = vsub.f32 1.0, %v1275
        %v1308 = vsub.f32 1.0, %v1276
        %v1309 = vsub.f32 1.0, %v1277
        %v1310 = vsub.f32 1.0, %v1278
        %v1311 = vsub.f32 1.0, %v1279
        %v1312 = vsub.f32 1.0, %v1280
        %v1313 = vsub.f32 1.0, %v1281
        %v1314 = vsub.f32 1.0, %v1282
        %v1315 = vsub.f32 1.0, %v1283
        %v1316 = vsub.f32 1.0, %v1284
        %v1317 = vsub.f32 1.0, %v1285
        %v1318 = vsub.f32 1.0, %v1286
        %v1319 = vsub.f32 1.0, %v1287
        %v1320 = vsub.f32 1.0, %v1288
        %v1321 = vsub.f32 1.0, %v1289
        %v1322 = vsub.f32 1.0, %v1290
        %v1323 = vsub.f32 1.0, %v1291
        %v1324 = vsub.f32 1.0, %v1292
        %v1325 = vsub.f32 1.0, %v1293
        %v1326 = vsub.f32 1.0, %v1294
        %v1327 = vsub.f32 1.0, %v1295
        %v1328 = vmul.f32 %v656, %v1296
        %v1329 = vmul.f32 %v657, %v1297
        %v1330 = vmul.f32 %v658, %v1298
        %v1331 = vmul.f32 %v659, %v1299
        %v1332 = vmul.f32 %v660, %v1300
        %v1333 = vmul.f32 %v661, %v1301
        %v1334 = vmul.f32 %v662, %v1302
        %v1335 = vmul.f32 %v663, %v1303
        %v1336 = vmul.f32 %v664, %v1304
        %v1337 = vmul.f32 %v665, %v1305
        %v1338 = vmul.f32 %v666, %v1306
        %v1339 = vmul.f32 %v667, %v1307
        %v1340 = vmul.f32 %v668, %v1308
        %v1341 = vmul.f32 %v669, %v1309
        %v1342 = vmul.f32 %v670, %v1310
        %v1343 = vmul.f32 %v671, %v1311
        %v1344 = vmul.f32 %v672, %v1312
        %v1345 = vmul.f32 %v673, %v1313
        %v1346 = vmul.f32 %v674, %v1314
        %v1347 = vmul.f32 %v675, %v1315
        %v1348 = vmul.f32 %v676, %v1316
        %v1349 = vmul.f32 %v677, %v1317
        %v1350 = vmul.f32 %v678, %v1318
        %v1351 = vmul.f32 %v679, %v1319
        %v1352 = vmul.f32 %v680, %v1320
        %v1353 = vmul.f32 %v681, %v1321
        %v1354 = vmul.f32 %v682, %v1322
        %v1355 = vmul.f32 %v683, %v1323
        %v1356 = vmul.f32 %v684, %v1324
        %v1357 = vmul.f32 %v685, %v1325
        %v1358 = vmul.f32 %v686, %v1326
        %v1359 = vmul.f32 %v687, %v1327
        %v1360 = vadd.f32 %v1328, 1.0
        %v1361 = vadd.f32 %v1329, 1.0
        %v1362 = vadd.f32 %v1330, 1.0
        %v1363 = vadd.f32 %v1331, 1.0
        %v1364 = vadd.f32 %v1332, 1.0
        %v1365 = vadd.f32 %v1333, 1.0
        %v1366 = vadd.f32 %v1334, 1.0
        %v1367 = vadd.f32 %v1335, 1.0
        %v1368 = vadd.f32 %v1336, 1.0
        %v1369 = vadd.f32 %v1337, 1.0
        %v1370 = vadd.f32 %v1338, 1.0
        %v1371 = vadd.f32 %v1339, 1.0
        %v1372 = vadd.f32 %v1340, 1.0
        %v1373 = vadd.f32 %v1341, 1.0
        %v1374 = vadd.f32 %v1342, 1.0
        %v1375 = vadd.f32 %v1343, 1.0
        %v1376 = vadd.f32 %v1344, 1.0
        %v1377 = vadd.f32 %v1345, 1.0
        %v1378 = vadd.f32 %v1346, 1.0
        %v1379 = vadd.f32 %v1347, 1.0
        %v1380 = vadd.f32 %v1348, 1.0
        %v1381 = vadd.f32 %v1349, 1.0
        %v1382 = vadd.f32 %v1350, 1.0
        %v1383 = vadd.f32 %v1351, 1.0
        %v1384 = vadd.f32 %v1352, 1.0
        %v1385 = vadd.f32 %v1353, 1.0
        %v1386 = vadd.f32 %v1354, 1.0
        %v1387 = vadd.f32 %v1355, 1.0
        %v1388 = vadd.f32 %v1356, 1.0
        %v1389 = vadd.f32 %v1357, 1.0
        %v1390 = vadd.f32 %v1358, 1.0
        %v1391 = vadd.f32 %v1359, 1.0
        %v1392 = vmul.f32 %v560, %v1360
        %v1393 = vmul.f32 %v561, %v1361
        %v1394 = vmul.f32 %v562, %v1362
        %v1395 = vmul.f32 %v563, %v1363
        %v1396 = vmul.f32 %v564, %v1364
        %v1397 = vmul.f32 %v565, %v1365
        %v1398 = vmul.f32 %v566, %v1366
        %v1399 = vmul.f32 %v567, %v1367
        %v1400 = vmul.f32 %v568, %v1368
        %v1401 = vmul.f32 %v569, %v1369
        %v1402 = vmul.f32 %v570, %v1370
        %v1403 = vmul.f32 %v571, %v1371
        %v1404 = vmul.f32 %v572, %v1372
        %v1405 = vmul.f32 %v573, %v1373
        %v1406 = vmul.f32 %v574, %v1374
        %v1407 = vmul.f32 %v575, %v1375
        %v1408 = vmul.f32 %v576, %v1376
        %v1409 = vmul.f32 %v577, %v1377
        %v1410 = vmul.f32 %v578, %v1378
        %v1411 = vmul.f32 %v579, %v1379
        %v1412 = vmul.f32 %v580, %v1380
        %v1413 = vmul.f32 %v581, %v1381
        %v1414 = vmul.f32 %v582, %v1382
        %v1415 = vmul.f32 %v583, %v1383
        %v1416 = vmul.f32 %v584, %v1384
        %v1417 = vmul.f32 %v585, %v1385
        %v1418 = vmul.f32 %v586, %v1386
        %v1419 = vmul.f32 %v587, %v1387
        %v1420 = vmul.f32 %v588, %v1388
        %v1421 = vmul.f32 %v589, %v1389
        %v1422 = vmul.f32 %v590, %v1390
        %v1423 = vmul.f32 %v591, %v1391
        %v1424 = vpack.c.bf16 %v1394, %v1392
        %v1425 = vpack.c.bf16 %v1395, %v1393
        %v1426 = vpack.c.bf16 %v1398, %v1396
        %v1427 = vpack.c.bf16 %v1399, %v1397
        %v1428 = vpack.c.bf16 %v1402, %v1400
        %v1429 = vpack.c.bf16 %v1403, %v1401
        %v1430 = vpack.c.bf16 %v1406, %v1404
        %v1431 = vpack.c.bf16 %v1407, %v1405
        %v1432 = vpack.c.bf16 %v1410, %v1408
        %v1433 = vpack.c.bf16 %v1411, %v1409
        %v1434 = vpack.c.bf16 %v1414, %v1412
        %v1435 = vpack.c.bf16 %v1415, %v1413
        %v1436 = vpack.c.bf16 %v1418, %v1416
        %v1437 = vpack.c.bf16 %v1419, %v1417
        %v1438 = vpack.c.bf16 %v1422, %v1420
        %v1439 = vpack.c.bf16 %v1423, %v1421
        %v1440 = vld [vmem:[#allocation7] sm:$0xf]
        %v1441 = vld [vmem:[#allocation7 + $0x4] sm:$0xf]
        %v1442 = vld [vmem:[#allocation7 + $0x8] sm:$0xf]
        %v1443 = vld [vmem:[#allocation7 + $0xc] sm:$0xf]
        %v1444 = vld [vmem:[#allocation7 + $0x10] sm:$0xf]
        %v1445 = vld [vmem:[#allocation7 + $0x14] sm:$0xf]
        %v1446 = vld [vmem:[#allocation7 + $0x18] sm:$0xf]
        %v1447 = vld [vmem:[#allocation7 + $0x1c] sm:$0xf]
        %v1448 = vld [vmem:[#allocation7 + $0x20] sm:$0xf]
        %v1449 = vld [vmem:[#allocation7 + $0x24] sm:$0xf]
        %v1450 = vld [vmem:[#allocation7 + $0x28] sm:$0xf]
        %v1451 = vld [vmem:[#allocation7 + $0x2c] sm:$0xf]
        %v1452 = vld [vmem:[#allocation7 + $0x30] sm:$0xf]
        %v1453 = vld [vmem:[#allocation7 + $0x34] sm:$0xf]
        %v1454 = vld [vmem:[#allocation7 + $0x38] sm:$0xf]
        %v1455 = vld [vmem:[#allocation7 + $0x3c] sm:$0xf]
        %v1456 = vld [vmem:[#allocation7 + $0x40] sm:$0xf]
        %v1457 = vld [vmem:[#allocation7 + $0x44] sm:$0xf]
        %v1458 = vld [vmem:[#allocation7 + $0x48] sm:$0xf]
        %v1459 = vld [vmem:[#allocation7 + $0x4c] sm:$0xf]
        %v1460 = vld [vmem:[#allocation7 + $0x50] sm:$0xf]
        %v1461 = vld [vmem:[#allocation7 + $0x54] sm:$0xf]
        %v1462 = vld [vmem:[#allocation7 + $0x58] sm:$0xf]
        %v1463 = vld [vmem:[#allocation7 + $0x5c] sm:$0xf]
        %v1464 = vld [vmem:[#allocation7 + $0x60] sm:$0xf]
        %v1465 = vld [vmem:[#allocation7 + $0x64] sm:$0xf]
        %v1466 = vld [vmem:[#allocation7 + $0x68] sm:$0xf]
        %v1467 = vld [vmem:[#allocation7 + $0x6c] sm:$0xf]
        %v1468 = vld [vmem:[#allocation7 + $0x70] sm:$0xf]
        %v1469 = vld [vmem:[#allocation7 + $0x74] sm:$0xf]
        %v1470 = vld [vmem:[#allocation7 + $0x78] sm:$0xf]
        %v1471 = vld [vmem:[#allocation7 + $0x7c] sm:$0xf]
        %v1472 = vld [vmem:[%s4] sm:$0x1]
        %v1474 = vlaneseq
        %v1475 = vshrl.u32 %v1474, 7
        %v1476 = vsub.s32 0, %v1475
        %v1477 = vrot.slane %v1472, %v1476
        %v1511 = vunpack.c.l.b16 %v1440
        %v1512 = vunpack.c.l.b16 %v1441
        %v1513 = vunpack.c.l.b16 %v1442
        %v1514 = vunpack.c.l.b16 %v1443
        %v1515 = vunpack.c.l.b16 %v1444
        %v1516 = vunpack.c.l.b16 %v1445
        %v1517 = vunpack.c.l.b16 %v1446
        %v1518 = vunpack.c.l.b16 %v1447
        %v1519 = vunpack.c.l.b16 %v1448
        %v1520 = vunpack.c.l.b16 %v1449
        %v1521 = vunpack.c.l.b16 %v1450
        %v1522 = vunpack.c.l.b16 %v1451
        %v1523 = vunpack.c.l.b16 %v1452
        %v1524 = vunpack.c.l.b16 %v1453
        %v1525 = vunpack.c.l.b16 %v1454
        %v1526 = vunpack.c.l.b16 %v1455
        %v1527 = vunpack.c.l.b16 %v1456
        %v1528 = vunpack.c.l.b16 %v1457
        %v1529 = vunpack.c.l.b16 %v1458
        %v1530 = vunpack.c.l.b16 %v1459
        %v1531 = vunpack.c.l.b16 %v1460
        %v1532 = vunpack.c.l.b16 %v1461
        %v1533 = vunpack.c.l.b16 %v1462
        %v1534 = vunpack.c.l.b16 %v1463
        %v1535 = vunpack.c.l.b16 %v1464
        %v1536 = vunpack.c.l.b16 %v1465
        %v1537 = vunpack.c.l.b16 %v1466
        %v1538 = vunpack.c.l.b16 %v1467
        %v1539 = vunpack.c.l.b16 %v1468
        %v1540 = vunpack.c.l.b16 %v1469
        %v1541 = vunpack.c.l.b16 %v1470
        %v1542 = vunpack.c.l.b16 %v1471
        %v1543 = vpack.c.b16 %v1512, %v1511
        %v1544 = vpack.c.b16 %v1514, %v1513
        %v1545 = vpack.c.b16 %v1516, %v1515
        %v1546 = vpack.c.b16 %v1518, %v1517
        %v1547 = vpack.c.b16 %v1520, %v1519
        %v1548 = vpack.c.b16 %v1522, %v1521
        %v1549 = vpack.c.b16 %v1524, %v1523
        %v1550 = vpack.c.b16 %v1526, %v1525
        %v1551 = vpack.c.b16 %v1528, %v1527
        %v1552 = vpack.c.b16 %v1530, %v1529
        %v1553 = vpack.c.b16 %v1532, %v1531
        %v1554 = vpack.c.b16 %v1534, %v1533
        %v1555 = vpack.c.b16 %v1536, %v1535
        %v1556 = vpack.c.b16 %v1538, %v1537
        %v1557 = vpack.c.b16 %v1540, %v1539
        %v1558 = vpack.c.b16 %v1542, %v1541
        %1575 = vmatprep.subr.bf16.mxu0 0
        %1576 = vmatpush1.bf16.msra.mxu0 %v1543
        %1577 = vmatprep.subr.bf16.mxu0 0
        %1578 = vmatpush1.bf16.msra.mxu0 %v1544
        %1579 = vmatprep.subr.bf16.mxu0 0
        %1580 = vmatpush1.bf16.msra.mxu0 %v1545
        %1581 = vmatprep.subr.bf16.mxu0 0
        %1582 = vmatpush1.bf16.msra.mxu0 %v1546
        %1583 = vmatprep.subr.bf16.mxu0 0
        %1584 = vmatpush1.bf16.msra.mxu0 %v1547
        %1585 = vmatprep.subr.bf16.mxu0 0
        %1586 = vmatpush1.bf16.msra.mxu0 %v1548
        %1587 = vmatprep.subr.bf16.mxu0 0
        %1588 = vmatpush1.bf16.msra.mxu0 %v1549
        %1589 = vmatprep.subr.bf16.mxu0 0
        %1590 = vmatpush1.bf16.msra.mxu0 %v1550
        %1591 = vmatprep.subr.bf16.mxu0 0
        %1592 = vmatpush1.bf16.msra.mxu0 %v1551
        %1593 = vmatprep.subr.bf16.mxu0 0
        %1594 = vmatpush1.bf16.msra.mxu0 %v1552
        %1595 = vmatprep.subr.bf16.mxu0 0
        %1596 = vmatpush1.bf16.msra.mxu0 %v1553
        %1597 = vmatprep.subr.bf16.mxu0 0
        %1598 = vmatpush1.bf16.msra.mxu0 %v1554
        %1599 = vmatprep.subr.bf16.mxu0 0
        %1600 = vmatpush1.bf16.msra.mxu0 %v1555
        %1601 = vmatprep.subr.bf16.mxu0 0
        %1602 = vmatpush1.bf16.msra.mxu0 %v1556
        %1603 = vmatprep.subr.bf16.mxu0 0
        %1604 = vmatpush1.bf16.msra.mxu0 %v1557
        %1605 = vmatprep.subr.bf16.mxu0 0
        %1606 = vmatpush1.bf16.msra.mxu0 %v1558
        %1607 = vmatprep.mubr.bf16.mxu0 %v1425
        %1608 = vmatmul.mubr.bf16.gmra.mrb[0].mxu0 %v1424
        %v1609 = vpop.f32.mrb[0].mxu0
        %v1610 = vadd.f32 %v1477, %v1609
        %v1611 = vpop.f32.mrb[0].mxu0
        %v1612 = vpop.f32.mrb[0].mxu0
        %v1613 = vadd.f32 %v1477, %v1612
        %v1614 = vpop.f32.mrb[0].mxu0
        %1615 = vmatprep.mubr.bf16.mxu0 %v1427
        %1616 = vmatmul.mubr.bf16.gmra.mrb[0].mxu0 %v1426
        %v1617 = vpop.f32.mrb[0].mxu0
        %v1618 = vadd.f32 %v1477, %v1617
        %v1619 = vpop.f32.mrb[0].mxu0
        %v1620 = vpop.f32.mrb[0].mxu0
        %v1621 = vadd.f32 %v1477, %v1620
        %v1622 = vpop.f32.mrb[0].mxu0
        %1623 = vmatprep.mubr.bf16.mxu0 %v1429
        %1624 = vmatmul.mubr.bf16.gmra.mrb[0].mxu0 %v1428
        %v1625 = vpop.f32.mrb[0].mxu0
        %v1626 = vadd.f32 %v1477, %v1625
        %v1627 = vpop.f32.mrb[0].mxu0
        %v1628 = vpop.f32.mrb[0].mxu0
        %v1629 = vadd.f32 %v1477, %v1628
        %v1630 = vpop.f32.mrb[0].mxu0
        %1631 = vmatprep.mubr.bf16.mxu0 %v1431
        %1632 = vmatmul.mubr.bf16.gmra.mrb[0].mxu0 %v1430
        %v1633 = vpop.f32.mrb[0].mxu0
        %v1634 = vadd.f32 %v1477, %v1633
        %v1635 = vpop.f32.mrb[0].mxu0
        %v1636 = vpop.f32.mrb[0].mxu0
        %v1637 = vadd.f32 %v1477, %v1636
        %v1638 = vpop.f32.mrb[0].mxu0
        %1639 = vmatprep.mubr.bf16.mxu0 %v1433
        %1640 = vmatmul.mubr.bf16.gmra.mrb[0].mxu0 %v1432
        %v1641 = vpop.f32.mrb[0].mxu0
        %v1642 = vadd.f32 %v1477, %v1641
        %v1643 = vpop.f32.mrb[0].mxu0
        %v1644 = vpop.f32.mrb[0].mxu0
        %v1645 = vadd.f32 %v1477, %v1644
        %v1646 = vpop.f32.mrb[0].mxu0
        %1647 = vmatprep.mubr.bf16.mxu0 %v1435
        %1648 = vmatmul.mubr.bf16.gmra.mrb[0].mxu0 %v1434
        %v1649 = vpop.f32.mrb[0].mxu0
        %v1650 = vadd.f32 %v1477, %v1649
        %v1651 = vpop.f32.mrb[0].mxu0
        %v1652 = vpop.f32.mrb[0].mxu0
        %v1653 = vadd.f32 %v1477, %v1652
        %v1654 = vpop.f32.mrb[0].mxu0
        %1655 = vmatprep.mubr.bf16.mxu0 %v1437
        %1656 = vmatmul.mubr.bf16.gmra.mrb[0].mxu0 %v1436
        %v1657 = vpop.f32.mrb[0].mxu0
        %v1658 = vadd.f32 %v1477, %v1657
        %v1659 = vpop.f32.mrb[0].mxu0
        %v1660 = vpop.f32.mrb[0].mxu0
        %v1661 = vadd.f32 %v1477, %v1660
        %v1662 = vpop.f32.mrb[0].mxu0
        %1663 = vmatprep.mubr.bf16.mxu0 %v1439
        %1664 = vmatmul.mubr.bf16.gmra.mrb[0].mxu0 %v1438
        %v1665 = vpop.f32.mrb[0].mxu0
        %v1666 = vadd.f32 %v1477, %v1665
        %v1667 = vpop.f32.mrb[0].mxu0
        %v1668 = vpop.f32.mrb[0].mxu0
        %v1669 = vadd.f32 %v1477, %v1668
        %v1670 = vpop.f32.mrb[0].mxu0
        %1671 = vdwg.mxu0
        %1672 = vst [vmem:[%s271] sm:$0xff] %v1610
        %1673 = vst [vmem:[%s271 + $0x8] sm:$0xff] %v1613
        %1674 = vst [vmem:[%s271 + $0x10] sm:$0xff] %v1618
        %1675 = vst [vmem:[%s271 + $0x18] sm:$0xff] %v1621
        %1676 = vst [vmem:[%s271 + $0x20] sm:$0xff] %v1626
        %1677 = vst [vmem:[%s271 + $0x28] sm:$0xff] %v1629
        %1678 = vst [vmem:[%s271 + $0x30] sm:$0xff] %v1634
        %1679 = vst [vmem:[%s271 + $0x38] sm:$0xff] %v1637
        %1680 = vst [vmem:[%s271 + $0x40] sm:$0xff] %v1642
        %1681 = vst [vmem:[%s271 + $0x48] sm:$0xff] %v1645
        %1682 = vst [vmem:[%s271 + $0x50] sm:$0xff] %v1650
        %1683 = vst [vmem:[%s271 + $0x58] sm:$0xff] %v1653
        %1684 = vst [vmem:[%s271 + $0x60] sm:$0xff] %v1658
        %1685 = vst [vmem:[%s271 + $0x68] sm:$0xff] %v1661
        %1686 = vst [vmem:[%s271 + $0x70] sm:$0xff] %v1666
        %1687 = vst [vmem:[%s271 + $0x78] sm:$0xff] %v1669
        %s1688 = sand.u32 %s141, 1
        %s1689 = scalar_lea.sflag [#allocation4], %s1688
        %s1690 = sand.u32 %s141, 1
        %s1691 = smul.addr %s1690, 128
        %s1692 = scalar_lea.vmem [#allocation8], %s1691
        // Predicated region
        $region53: #{tpu_custom_call.1} parent=39 // pred_check
          %p1693 = pneg %p151
        $region54: #{tpu_custom_call.1} parent=39 // pred_check_branch
          %1695 = sbr.rel (%p1693) target = $region56
        $region55: #{tpu_custom_call.1} parent=39 // pred_region
          %s1696 = smul.u32 16, %s23
          %s1698 = ssub.s32 2048, 2048
          %1699 = vsyncadd %s1689, %s1698
          %s1700 = smul.addr %s1696, 128
          %s1701 = scalar_lea.hbm %s5, %s1700
          %s1702 = sshll.u32 %s1692, 4
          %s1703 = int_to_ptr.vmem [resolvable:$true] %s1702
          %1708 = dma.vmem_to_hbm [thread:$0]  %s1703, 2048, %s1701, %s1689, 128, 128, 8
        $region56: #{tpu_custom_call.1} parent=39 // pred_fallthru
          _
      $region40: #{tpu_custom_call.1} parent=5 // pred_fallthru
        _
      %p1709 = scmp.le.s32.totalorder 2, %s18
      // Predicated region
      $region57: #{tpu_custom_call.1} parent=5 // pred_check
        %p1710 = pneg %p1709
      $region58: #{tpu_custom_call.1} parent=5 // pred_check_branch
        %1712 = sbr.rel (%p1710) target = $region60
      $region59: #{tpu_custom_call.1} parent=5 // pred_region
        %s1713 = ssub.s32 %s18, 2
        // Predicated region
        $region61: #{tpu_custom_call.1} parent=59 // pred_check
          %p1714 = pneg %p157
        $region62: #{tpu_custom_call.1} parent=59 // pred_check_branch
          %1716 = sbr.rel (%p1714) target = $region64
        $region63: #{tpu_custom_call.1} parent=59 // pred_region
          %s1717 = sand.u32 %s142, 1
          %s1718 = scalar_lea.sflag [#allocation4], %s1717
          %s1719 = sand.u32 %s142, 1
          %s1720 = smul.addr %s1719, 128
          %s1721 = scalar_lea.vmem [#allocation8], %s1720
          %1722 = dma.done %s1718, 2048
        $region64: #{tpu_custom_call.1} parent=59 // pred_fallthru
          _
      $region60: #{tpu_custom_call.1} parent=5 // pred_fallthru
        _
    $region6: #{tpu_custom_call.1} parent=1 // loop_footer
      %s22 = sadd.s32 1, %s18
    $region7: #{tpu_custom_call.1} parent=1 // loop_footer_branch
      %17 = sbr.rel target = $region3
    $region8: #{tpu_custom_call.1} parent=1 // loop_exit
      _
    %1723 = vsyncpa [#allocation3], 1
    %s1724 = scalar_lea.sflag [#allocation3], 1
    %1725 = vsyncpa %s1724, 1
    %1726 = vsyncpa [#allocation6], 1
    %1727 = vsyncpa [#allocation4], 1
    %s1728 = scalar_lea.sflag [#allocation4], 1
    %1729 = vsyncpa %s1728, 1

</llo_original>
